<compile_context>
chip_gen: v6e
topology: v6e:2x2x1
jax: 0.10.0
libtpu: 0.0.40
codegen_flags: <defaults>
</compile_context>

<pallas_src>
import functools
import re

import jax
import jax.numpy as jnp
from jax import lax
from jax.experimental import pallas as pl
from jax.experimental.pallas import tpu as pltpu


def _next_pow2(n):
    return 1 << (max(int(n), 1) - 1).bit_length()


def _round_up(x, m):
    return ((x + m - 1) // m) * m


def _vmem_capacity_bytes():
    try:
        info = pltpu.get_tpu_info()
        cap = getattr(info, "vmem_capacity_bytes", None)
        if cap:
            return int(cap)
    except Exception:
        pass
    return 128 * 1024 * 1024


def _vmem_budgets():
    """(vmem_limit_bytes for CompilerParams, tile budget for _auto_p_tile)."""
    cap = _vmem_capacity_bytes()
    if cap >= 100 * 1024 * 1024:          # v5e / v6e class: 128 MiB VMEM
        return 96 * 1024 * 1024, 48 * 1024 * 1024
    return cap // 2, cap // 4             # v7x class: 64 MiB -> 32 MiB / 16 MiB


def _tensorcores_per_chip():
    try:
        kind = jax.devices()[0].device_kind
        m = re.search(r"(\d+)", kind)
        if m and int(m.group(1)) >= 7:    # v7x: 2 TensorCores per chip
            return 2
    except Exception:
        pass
    return 1


def _auto_p_tile(H, W, D, NB, budget_bytes):
    """Largest lane-tile (multiple of 128, <=4096) whose working set fits budget."""
    C = D + NB
    c_pad = max(8, _next_pow2(C))
    per_lane_words = (
        2 * (D + 2 * NB + C)                # double-buffered pipelined blocks
        + NB * (H + W + min(H, W) + 6)      # selectors, matmul acc, coords/val
        + 4 * c_pad                         # sort tile + roll/partner temporaries
    )
    per_lane_bytes = 5 * per_lane_words     # 4 B/f32 * 1.25 safety factor
    tile = budget_bytes // max(per_lane_bytes, 1)
    return max(128, min(4096, (tile // 128) * 128))


# ---------------------------------- kernel ----------------------------------

def _propagation_kernel(depth_ref, img_ref, g_ref, out_ref, *,
                        height, width, neighbors, contract_h):
    # depth_ref: (1, D, PT)         depth samples for this pixel tile
    # img_ref  : (1, W, H) if contract_h else (1, H, W)   middle depth channel
    # g_ref    : (1, 1, 2, NB*PT)   grid coords, [x; y] rows, neighbour-major lanes
    # out_ref  : (1, C, PT)         channel-sorted propagated depth
    _, D, PT = depth_ref.shape
    H, W = height, width
    NB = neighbors
    C = D + NB
    C_pad = max(8, _next_pow2(C))
    f32 = jnp.float32

    gxy = g_ref[0, 0].astype(f32)           # (2, NB*PT)
    gx = gxy[0:1, :]
    gy = gxy[1:2, :]

    # ---- bilinear sample of the middle channel (grid_sample, border padding,
    #      align_corners=False); all NB neighbours fused in one wide matmul ----
    # Border padding == clip the un-normalized coords; with clipped coords the
    # bilinear weights are exactly the tent kernel relu(1 - |i - coord|).
    x = jnp.clip((gx + 1.0) * (W * 0.5) - 0.5, 0.0, float(W - 1))
    y = jnp.clip((gy + 1.0) * (H * 0.5) - 0.5, 0.0, float(H - 1))

    iota_h = lax.broadcasted_iota(jnp.int32, (H, 1), 0).astype(f32)
    iota_w = lax.broadcasted_iota(jnp.int32, (W, 1), 0).astype(f32)
    rowsel = jnp.maximum(0.0, 1.0 - jnp.abs(iota_h - y))    # (H, NB*PT)
    colsel = jnp.maximum(0.0, 1.0 - jnp.abs(iota_w - x))    # (W, NB*PT)

    img = img_ref[0].astype(f32)
    if contract_h:
        # Contract the (larger) H dim on the MXU; VPU multiply+reduce over W.
        acc = jnp.dot(img, rowsel, preferred_element_type=f32)   # (W, NB*PT)
        val = jnp.sum(colsel * acc, axis=0, keepdims=True)       # (1, NB*PT)
    else:
        # Contract the (larger) W dim on the MXU; VPU multiply+reduce over H.
        acc = jnp.dot(img, colsel, preferred_element_type=f32)   # (H, NB*PT)
        val = jnp.sum(rowsel * acc, axis=0, keepdims=True)       # (1, NB*PT)

    # ---- assemble the (C_pad, PT) sort tile: depth channels, then the NB
    #      gathered neighbours (lane-aligned chunks), then +inf padding --------
    depth_blk = depth_ref[0].astype(f32)                                   # (D, PT)
    pieces = [depth_blk] + [val[:, n * PT:(n + 1) * PT] for n in range(NB)]
    if C_pad > C:
        pieces.append(jnp.full((C_pad - C, PT), jnp.inf, dtype=f32))
    v = jnp.concatenate(pieces, axis=0)                                    # (C_pad, PT)

    # ---- torch.sort(dim=1): bitonic network, vectorized across sublanes -----
    # TODO(synk): lax.sort has no Mosaic lowering; a static bitonic network is
    # used instead (ascending; +inf padding sorts to the tail and is dropped).
    c_iota = lax.broadcasted_iota(jnp.int32, (C_pad, 1), 0)                # (C_pad, 1)
    # Single-vreg probe of the sublane-rotate sign convention (the XOR-partner
    # selection is correct under either roll direction; folded by the compiler
    # when the convention is statically known).
    probe = pltpu.roll(lax.broadcasted_iota(jnp.int32, (8, 128), 0), 1, axis=0)
    flip = probe[0:1, 0:1] == 1                                            # (1, 1)

    size = 2
    while size <= C_pad:
        stride = size // 2
        while stride >= 1:
            # Under jnp.roll semantics: r_fwd[i] = v[(i + stride) % C_pad],
            #                           r_bwd[i] = v[(i - stride) % C_pad].
            r_fwd = pltpu.roll(v, C_pad - stride, axis=0)
            r_bwd = pltpu.roll(v, stride, axis=0)
            is_low = (c_iota & stride) == 0            # partner sits at i + stride
            partner = jnp.where(jnp.logical_xor(is_low, flip), r_fwd, r_bwd)
            take_min = ((c_iota & size) == 0) == is_low
            v = jnp.where(take_min, jnp.minimum(v, partner),
                          jnp.maximum(v, partner))
            stride //= 2
        size *= 2

    # Single dense (C, PT) lane-dense store.
    out_ref[0] = v[:C, :].astype(out_ref.dtype)


# --------------------------------- wrapper ----------------------------------

def propagation_forward(batch, height, width, depth_sample, grid,
                        depth_min=None, depth_max=None,
                        depth_interval_scale=None, neighbors=16, p_tile=None):
    """JAX/Pallas equivalent of Propagation.forward.

    depth_min / depth_max / depth_interval_scale are accepted for API fidelity
    but (as in the torch module) unused by the forward pass.
    """
    B, D, H, W = depth_sample.shape
    assert (B, H, W) == (batch, height, width)
    NB = neighbors
    assert grid.shape == (B, NB * H, W, 2), grid.shape
    C = D + NB
    P = H * W

    vmem_limit, tile_budget = _vmem_budgets()
    if p_tile is None:
        p_tile = _auto_p_tile(H, W, D, NB, tile_budget)
    p_tile = max(128, (int(p_tile) // 128) * 128)
    p_tile = min(p_tile, _round_up(P, 128))
    if B == 1 and _tensorcores_per_chip() >= 2:
        # Keep both TensorCores busy on v7x: at least 2 tiles on a parallel axis.
        half = max(128, (_round_up(P, 128) // 2 // 128) * 128)
        p_tile = min(p_tile, half)

    P_pad = _round_up(P, p_tile)
    NPT = P_pad // p_tile
    NBP = NB * p_tile

    f32 = jnp.float32

    # Depth with pixels flattened on the (lane) last axis; pad only if needed.
    depth_flat = depth_sample.reshape(B, D, P)
    if P_pad != P:
        depth_flat = jnp.pad(depth_flat, ((0, 0), (0, 0), (0, P_pad - P)))

    # Middle depth channel.  Contract the larger spatial dim on the MXU.
    contract_h = H >= W
    mid = depth_sample[:, D // 2].astype(f32)                     # (B, H, W)
    img_mat = jnp.transpose(mid, (0, 2, 1)) if contract_h else mid

    # Grid -> per-pixel-tile, neighbour-major lane layout, x/y packed together
    # (ONE transpose pass over the grid instead of two):
    #   g_w[b, t, c, n * p_tile + q] = grid_c[b, n, t * p_tile + q]
    g = grid.reshape(B, NB, P, 2).astype(f32)
    if P_pad != P:
        g = jnp.pad(g, ((0, 0), (0, 0), (0, P_pad - P), (0, 0)))
    g_w = (g.reshape(B, NB, NPT, p_tile, 2)
             .transpose(0, 2, 4, 1, 3)
             .reshape(B, NPT, 2, NBP))

    kernel = functools.partial(_propagation_kernel, height=H, width=W,
                               neighbors=NB, contract_h=contract_h)

    out_flat = pl.pallas_call(
        kernel,
        out_shape=jax.ShapeDtypeStruct((B, C, P_pad), depth_sample.dtype),
        grid=(B, NPT),
        in_specs=[
            pl.BlockSpec((1, D, p_tile), lambda b, t: (b, 0, t)),
            pl.BlockSpec(img_mat.shape[1:] and (1,) + img_mat.shape[1:],
                         lambda b, t: (b, 0, 0)),                 # VMEM-resident per batch
            pl.BlockSpec((1, 1, 2, NBP), lambda b, t: (b, t, 0, 0)),
        ],
        out_specs=pl.BlockSpec((1, C, p_tile), lambda b, t: (b, 0, t)),
        compiler_params=pltpu.CompilerParams(
            dimension_semantics=("parallel", "parallel"),
            vmem_limit_bytes=vmem_limit,
        ),
    )(depth_flat, img_mat, g_w)

    return out_flat[:, :, :P].reshape(B, C, H, W)


# ----------------------------- pure-JAX reference -----------------------------

def _grid_sample_border_ref(img, grid):
    # img: (B, H, W), grid: (B, Hg, Wg, 2); bilinear, border, align_corners=False.
    B, H, W = img.shape
    gx = grid[..., 0]
    gy = grid[..., 1]
    x = jnp.clip(((gx + 1.0) * W - 1.0) * 0.5, 0.0, W - 1.0)
    y = jnp.clip(((gy + 1.0) * H - 1.0) * 0.5, 0.0, H - 1.0)
    x0 = jnp.floor(x)
    y0 = jnp.floor(y)
    wx1 = x - x0
    wy1 = y - y0
    x0i = x0.astype(jnp.int32)
    y0i = y0.astype(jnp.int32)
    x1i = jnp.minimum(x0i + 1, W - 1)
    y1i = jnp.minimum(y0i + 1, H - 1)
    outs = []
    for b in range(B):
        im = img[b]
        v00 = im[y0i[b], x0i[b]]
        v01 = im[y0i[b], x1i[b]]
        v10 = im[y1i[b], x0i[b]]
        v11 = im[y1i[b], x1i[b]]
        val = (v00 * (1 - wy1[b]) * (1 - wx1[b]) + v01 * (1 - wy1[b]) * wx1[b]
               + v10 * wy1[b] * (1 - wx1[b]) + v11 * wy1[b] * wx1[b])
        outs.append(val)
    return jnp.stack(outs)  # (B, Hg, Wg)


def propagation_reference(depth_sample, grid, neighbors):
    B, D, H, W = depth_sample.shape
    sampled = _grid_sample_border_ref(depth_sample[:, D // 2], grid)
    sampled = sampled.reshape(B, neighbors, H, W)
    cat = jnp.concatenate([depth_sample, sampled], axis=1)
    return jnp.sort(cat, axis=1)


# ------------------------------------ main ------------------------------------

if __name__ == "__main__":
    key = jax.random.PRNGKey(0)
    B, D, H, W = 2, 8, 16, 16
    NB = 16
    depth_min, depth_max, depth_interval_scale = 0.5, 10.0, 0.05

    k1, k2 = jax.random.split(key)
    depth_sample = jax.random.uniform(
        k1, (B, D, H, W), jnp.float32, minval=depth_min, maxval=depth_max)
    # grid slightly outside [-1, 1] to exercise border padding.
    grid = jax.random.uniform(
        k2, (B, NB * H, W, 2), jnp.float32, minval=-1.05, maxval=1.05)

    out = propagation_forward(B, H, W, depth_sample, grid,
                              depth_min, depth_max, depth_interval_scale,
                              neighbors=NB, p_tile=128)   # 2 pixel tiles -> grid (2, 2)
    out = jax.block_until_ready(out)

    ref = propagation_reference(depth_sample, grid, NB)
    assert out.shape == (B, D + NB, H, W), out.shape
    err = float(jnp.max(jnp.abs(out - ref)))
    assert err < 2e-4, f"max abs error {err}"
    print("KERNEL_OK")
</pallas_src>

<mosaic_0001>
module attributes {stable_mosaic.version = 11 : i64} {
  func.func @_propagation_kernel(%arg0: i32, %arg1: i32, %arg2: memref<1x8x128xf32, #tpu.memory_space<vmem>>, %arg3: memref<1x16x16xf32, #tpu.memory_space<vmem>>, %arg4: memref<1x1x2x2048xf32, #tpu.memory_space<vmem>>, %arg5: memref<1x24x128xf32, #tpu.memory_space<vmem>>) attributes {dimension_semantics = [#tpu.dimension_semantics<parallel>, #tpu.dimension_semantics<parallel>], iteration_bounds = array<i64: 2, 2>, scalar_prefetch = 0 : i64, scratch_operands = 0 : i64, tpu.core_type = #tpu.core_type<tc>, window_params = [{transform_indices = @transform_0, window_bounds = array<i64: 1, 8, 128>}, {transform_indices = @transform_1, window_bounds = array<i64: 1, 16, 16>}, {transform_indices = @transform_2, window_bounds = array<i64: 1, 1, 2, 2048>}, {transform_indices = @transform_3, window_bounds = array<i64: 1, 24, 128>}]} {
    %c0 = arith.constant 0 : index
    %c0_0 = arith.constant 0 : index
    %c0_1 = arith.constant 0 : index
    %c0_2 = arith.constant 0 : index
    %0 = vector.load %arg4[%c0, %c0_0, %c0_1, %c0_2] : memref<1x1x2x2048xf32, #tpu.memory_space<vmem>>, vector<1x1x2x2048xf32>
    %1 = vector.shape_cast %0 : vector<1x1x2x2048xf32> to vector<2x2048xf32>
    %2 = vector.extract_strided_slice %1 {offsets = [0, 0], sizes = [1, 2048], strides = [1, 1]} : vector<2x2048xf32> to vector<1x2048xf32>
    %3 = vector.extract_strided_slice %1 {offsets = [1, 0], sizes = [1, 2048], strides = [1, 1]} : vector<2x2048xf32> to vector<1x2048xf32>
    %cst = arith.constant 1.000000e+00 : f32
    %4 = vector.broadcast %cst : f32 to vector<1x2048xf32>
    %5 = arith.addf %2, %4 : vector<1x2048xf32>
    %cst_3 = arith.constant 8.000000e+00 : f32
    %6 = vector.broadcast %cst_3 : f32 to vector<1x2048xf32>
    %7 = arith.mulf %5, %6 : vector<1x2048xf32>
    %cst_4 = arith.constant 5.000000e-01 : f32
    %8 = vector.broadcast %cst_4 : f32 to vector<1x2048xf32>
    %9 = arith.subf %7, %8 : vector<1x2048xf32>
    %cst_5 = arith.constant 0.000000e+00 : f32
    %cst_6 = arith.constant 1.500000e+01 : f32
    %10 = vector.broadcast %cst_5 : f32 to vector<1x2048xf32>
    %11 = arith.maximumf %10, %9 : vector<1x2048xf32>
    %12 = vector.broadcast %cst_6 : f32 to vector<1x2048xf32>
    %13 = arith.minimumf %12, %11 : vector<1x2048xf32>
    %cst_7 = arith.constant 1.000000e+00 : f32
    %14 = vector.broadcast %cst_7 : f32 to vector<1x2048xf32>
    %15 = arith.addf %3, %14 : vector<1x2048xf32>
    %cst_8 = arith.constant 8.000000e+00 : f32
    %16 = vector.broadcast %cst_8 : f32 to vector<1x2048xf32>
    %17 = arith.mulf %15, %16 : vector<1x2048xf32>
    %cst_9 = arith.constant 5.000000e-01 : f32
    %18 = vector.broadcast %cst_9 : f32 to vector<1x2048xf32>
    %19 = arith.subf %17, %18 : vector<1x2048xf32>
    %cst_10 = arith.constant 0.000000e+00 : f32
    %cst_11 = arith.constant 1.500000e+01 : f32
    %20 = vector.broadcast %cst_10 : f32 to vector<1x2048xf32>
    %21 = arith.maximumf %20, %19 : vector<1x2048xf32>
    %22 = vector.broadcast %cst_11 : f32 to vector<1x2048xf32>
    %23 = arith.minimumf %22, %21 : vector<1x2048xf32>
    %24 = tpu.iota {dimensions = array<i32: 0>} : vector<16x1xi32>
    %25 = arith.sitofp %24 : vector<16x1xi32> to vector<16x1xf32>
    %26 = tpu.iota {dimensions = array<i32: 0>} : vector<16x1xi32>
    %27 = arith.sitofp %26 : vector<16x1xi32> to vector<16x1xf32>
    %28 = vector.broadcast %25 : vector<16x1xf32> to vector<16x2048xf32>
    %29 = vector.broadcast %23 : vector<1x2048xf32> to vector<16x2048xf32>
    %30 = arith.subf %28, %29 : vector<16x2048xf32>
    %31 = math.absf %30 : vector<16x2048xf32>
    %cst_12 = arith.constant 1.000000e+00 : f32
    %32 = vector.broadcast %cst_12 : f32 to vector<16x2048xf32>
    %33 = arith.subf %32, %31 : vector<16x2048xf32>
    %cst_13 = arith.constant 0.000000e+00 : f32
    %34 = vector.broadcast %cst_13 : f32 to vector<16x2048xf32>
    %35 = arith.maximumf %34, %33 : vector<16x2048xf32>
    %36 = vector.broadcast %27 : vector<16x1xf32> to vector<16x2048xf32>
    %37 = vector.broadcast %13 : vector<1x2048xf32> to vector<16x2048xf32>
    %38 = arith.subf %36, %37 : vector<16x2048xf32>
    %39 = math.absf %38 : vector<16x2048xf32>
    %cst_14 = arith.constant 1.000000e+00 : f32
    %40 = vector.broadcast %cst_14 : f32 to vector<16x2048xf32>
    %41 = arith.subf %40, %39 : vector<16x2048xf32>
    %cst_15 = arith.constant 0.000000e+00 : f32
    %42 = vector.broadcast %cst_15 : f32 to vector<16x2048xf32>
    %43 = arith.maximumf %42, %41 : vector<16x2048xf32>
    %c0_16 = arith.constant 0 : index
    %c0_17 = arith.constant 0 : index
    %c0_18 = arith.constant 0 : index
    %44 = vector.load %arg3[%c0_16, %c0_17, %c0_18] : memref<1x16x16xf32, #tpu.memory_space<vmem>>, vector<1x16x16xf32>
    %45 = vector.shape_cast %44 : vector<1x16x16xf32> to vector<16x16xf32>
    %cst_19 = arith.constant dense<0.000000e+00> : vector<16x2048xf32>
    %46 = tpu.matmul %45, %35, %cst_19 {dimension_numbers = #tpu.dot_dimension_numbers<[1], [0], [0], [1], [0, 0, 1, 1], [], []>} : vector<16x16xf32>, vector<16x2048xf32>, vector<16x2048xf32> -> vector<16x2048xf32>
    %47 = arith.mulf %43, %46 : vector<16x2048xf32>
    %cst_20 = arith.constant dense<0.000000e+00> : vector<2048xf32>
    %48 = vector.multi_reduction <add>, %47, %cst_20 [0] : vector<16x2048xf32> to vector<2048xf32>
    %49 = vector.shape_cast %48 : vector<2048xf32> to vector<1x2048xf32>
    %c0_21 = arith.constant 0 : index
    %c0_22 = arith.constant 0 : index
    %c0_23 = arith.constant 0 : index
    %50 = vector.load %arg2[%c0_21, %c0_22, %c0_23] : memref<1x8x128xf32, #tpu.memory_space<vmem>>, vector<1x8x128xf32>
    %51 = vector.shape_cast %50 : vector<1x8x128xf32> to vector<8x128xf32>
    %52 = vector.extract_strided_slice %49 {offsets = [0, 0], sizes = [1, 128], strides = [1, 1]} : vector<1x2048xf32> to vector<1x128xf32>
    %53 = vector.extract_strided_slice %49 {offsets = [0, 128], sizes = [1, 128], strides = [1, 1]} : vector<1x2048xf32> to vector<1x128xf32>
    %54 = vector.extract_strided_slice %49 {offsets = [0, 256], sizes = [1, 128], strides = [1, 1]} : vector<1x2048xf32> to vector<1x128xf32>
    %55 = vector.extract_strided_slice %49 {offsets = [0, 384], sizes = [1, 128], strides = [1, 1]} : vector<1x2048xf32> to vector<1x128xf32>
    %56 = vector.extract_strided_slice %49 {offsets = [0, 512], sizes = [1, 128], strides = [1, 1]} : vector<1x2048xf32> to vector<1x128xf32>
    %57 = vector.extract_strided_slice %49 {offsets = [0, 640], sizes = [1, 128], strides = [1, 1]} : vector<1x2048xf32> to vector<1x128xf32>
    %58 = vector.extract_strided_slice %49 {offsets = [0, 768], sizes = [1, 128], strides = [1, 1]} : vector<1x2048xf32> to vector<1x128xf32>
    %59 = vector.extract_strided_slice %49 {offsets = [0, 896], sizes = [1, 128], strides = [1, 1]} : vector<1x2048xf32> to vector<1x128xf32>
    %60 = vector.extract_strided_slice %49 {offsets = [0, 1024], sizes = [1, 128], strides = [1, 1]} : vector<1x2048xf32> to vector<1x128xf32>
    %61 = vector.extract_strided_slice %49 {offsets = [0, 1152], sizes = [1, 128], strides = [1, 1]} : vector<1x2048xf32> to vector<1x128xf32>
    %62 = vector.extract_strided_slice %49 {offsets = [0, 1280], sizes = [1, 128], strides = [1, 1]} : vector<1x2048xf32> to vector<1x128xf32>
    %63 = vector.extract_strided_slice %49 {offsets = [0, 1408], sizes = [1, 128], strides = [1, 1]} : vector<1x2048xf32> to vector<1x128xf32>
    %64 = vector.extract_strided_slice %49 {offsets = [0, 1536], sizes = [1, 128], strides = [1, 1]} : vector<1x2048xf32> to vector<1x128xf32>
    %65 = vector.extract_strided_slice %49 {offsets = [0, 1664], sizes = [1, 128], strides = [1, 1]} : vector<1x2048xf32> to vector<1x128xf32>
    %66 = vector.extract_strided_slice %49 {offsets = [0, 1792], sizes = [1, 128], strides = [1, 1]} : vector<1x2048xf32> to vector<1x128xf32>
    %67 = vector.extract_strided_slice %49 {offsets = [0, 1920], sizes = [1, 128], strides = [1, 1]} : vector<1x2048xf32> to vector<1x128xf32>
    %cst_24 = arith.constant 0x7F800000 : f32
    %68 = vector.broadcast %cst_24 : f32 to vector<8x128xf32>
    %69 = tpu.concatenate %51, %52, %53, %54, %55, %56, %57, %58, %59, %60, %61, %62, %63, %64, %65, %66 in 0 : vector<8x128xf32>, vector<1x128xf32>, vector<1x128xf32>, vector<1x128xf32>, vector<1x128xf32>, vector<1x128xf32>, vector<1x128xf32>, vector<1x128xf32>, vector<1x128xf32>, vector<1x128xf32>, vector<1x128xf32>, vector<1x128xf32>, vector<1x128xf32>, vector<1x128xf32>, vector<1x128xf32>, vector<1x128xf32> -> vector<23x128xf32>
    %70 = tpu.concatenate %67, %68 in 0 : vector<1x128xf32>, vector<8x128xf32> -> vector<9x128xf32>
    %71 = tpu.concatenate %69, %70 in 0 : vector<23x128xf32>, vector<9x128xf32> -> vector<32x128xf32>
    %72 = tpu.iota {dimensions = array<i32: 0>} : vector<32x1xi32>
    %73 = tpu.iota {dimensions = array<i32: 0>} : vector<8x128xi32>
    %c1_i32 = arith.constant 1 : i32
    %74 = tpu.dynamic_rotate %73 by %c1_i32 dim 0 : vector<8x128xi32>, i32 -> vector<8x128xi32>
    %75 = vector.extract_strided_slice %74 {offsets = [0, 0], sizes = [1, 1], strides = [1, 1]} : vector<8x128xi32> to vector<1x1xi32>
    %c1_i32_25 = arith.constant 1 : i32
    %76 = vector.broadcast %c1_i32_25 : i32 to vector<1x1xi32>
    %77 = arith.cmpi eq, %75, %76 : vector<1x1xi32>
    %c31_i32 = arith.constant 31 : i32
    %78 = tpu.dynamic_rotate %71 by %c31_i32 dim 0 : vector<32x128xf32>, i32 -> vector<32x128xf32>
    %c1_i32_26 = arith.constant 1 : i32
    %79 = tpu.dynamic_rotate %71 by %c1_i32_26 dim 0 : vector<32x128xf32>, i32 -> vector<32x128xf32>
    %c1_i32_27 = arith.constant 1 : i32
    %80 = vector.broadcast %c1_i32_27 : i32 to vector<32x1xi32>
    %81 = arith.andi %72, %80 : vector<32x1xi32>
    %c0_i32 = arith.constant 0 : i32
    %82 = vector.broadcast %c0_i32 : i32 to vector<32x1xi32>
    %83 = arith.cmpi eq, %81, %82 : vector<32x1xi32>
    %84 = vector.broadcast %77 : vector<1x1xi1> to vector<32x1xi1>
    %85 = arith.xori %83, %84 : vector<32x1xi1>
    %86 = vector.shape_cast %85 : vector<32x1xi1> to vector<32x1xi1>
    %87 = vector.broadcast %86 : vector<32x1xi1> to vector<32x128xi1>
    %88 = arith.select %87, %78, %79 : vector<32x128xi1>, vector<32x128xf32>
    %c2_i32 = arith.constant 2 : i32
    %89 = vector.broadcast %c2_i32 : i32 to vector<32x1xi32>
    %90 = arith.andi %72, %89 : vector<32x1xi32>
    %c0_i32_28 = arith.constant 0 : i32
    %91 = vector.broadcast %c0_i32_28 : i32 to vector<32x1xi32>
    %92 = arith.cmpi eq, %90, %91 : vector<32x1xi32>
    %93 = arith.xori %92, %83 : vector<32x1xi1>
    %cst_29 = arith.constant dense<true> : vector<32x1xi1>
    %94 = arith.xori %93, %cst_29 : vector<32x1xi1>
    %95 = arith.minimumf %71, %88 : vector<32x128xf32>
    %96 = arith.maximumf %71, %88 : vector<32x128xf32>
    %97 = vector.shape_cast %94 : vector<32x1xi1> to vector<32x1xi1>
    %98 = vector.broadcast %97 : vector<32x1xi1> to vector<32x128xi1>
    %99 = arith.select %98, %95, %96 : vector<32x128xi1>, vector<32x128xf32>
    %c30_i32 = arith.constant 30 : i32
    %100 = tpu.dynamic_rotate %99 by %c30_i32 dim 0 : vector<32x128xf32>, i32 -> vector<32x128xf32>
    %c2_i32_30 = arith.constant 2 : i32
    %101 = tpu.dynamic_rotate %99 by %c2_i32_30 dim 0 : vector<32x128xf32>, i32 -> vector<32x128xf32>
    %c2_i32_31 = arith.constant 2 : i32
    %102 = vector.broadcast %c2_i32_31 : i32 to vector<32x1xi32>
    %103 = arith.andi %72, %102 : vector<32x1xi32>
    %c0_i32_32 = arith.constant 0 : i32
    %104 = vector.broadcast %c0_i32_32 : i32 to vector<32x1xi32>
    %105 = arith.cmpi eq, %103, %104 : vector<32x1xi32>
    %106 = vector.broadcast %77 : vector<1x1xi1> to vector<32x1xi1>
    %107 = arith.xori %105, %106 : vector<32x1xi1>
    %108 = vector.shape_cast %107 : vector<32x1xi1> to vector<32x1xi1>
    %109 = vector.broadcast %108 : vector<32x1xi1> to vector<32x128xi1>
    %110 = arith.select %109, %100, %101 : vector<32x128xi1>, vector<32x128xf32>
    %c4_i32 = arith.constant 4 : i32
    %111 = vector.broadcast %c4_i32 : i32 to vector<32x1xi32>
    %112 = arith.andi %72, %111 : vector<32x1xi32>
    %c0_i32_33 = arith.constant 0 : i32
    %113 = vector.broadcast %c0_i32_33 : i32 to vector<32x1xi32>
    %114 = arith.cmpi eq, %112, %113 : vector<32x1xi32>
    %115 = arith.xori %114, %105 : vector<32x1xi1>
    %cst_34 = arith.constant dense<true> : vector<32x1xi1>
    %116 = arith.xori %115, %cst_34 : vector<32x1xi1>
    %117 = arith.minimumf %99, %110 : vector<32x128xf32>
    %118 = arith.maximumf %99, %110 : vector<32x128xf32>
    %119 = vector.shape_cast %116 : vector<32x1xi1> to vector<32x1xi1>
    %120 = vector.broadcast %119 : vector<32x1xi1> to vector<32x128xi1>
    %121 = arith.select %120, %117, %118 : vector<32x128xi1>, vector<32x128xf32>
    %c31_i32_35 = arith.constant 31 : i32
    %122 = tpu.dynamic_rotate %121 by %c31_i32_35 dim 0 : vector<32x128xf32>, i32 -> vector<32x128xf32>
    %c1_i32_36 = arith.constant 1 : i32
    %123 = tpu.dynamic_rotate %121 by %c1_i32_36 dim 0 : vector<32x128xf32>, i32 -> vector<32x128xf32>
    %c1_i32_37 = arith.constant 1 : i32
    %124 = vector.broadcast %c1_i32_37 : i32 to vector<32x1xi32>
    %125 = arith.andi %72, %124 : vector<32x1xi32>
    %c0_i32_38 = arith.constant 0 : i32
    %126 = vector.broadcast %c0_i32_38 : i32 to vector<32x1xi32>
    %127 = arith.cmpi eq, %125, %126 : vector<32x1xi32>
    %128 = vector.broadcast %77 : vector<1x1xi1> to vector<32x1xi1>
    %129 = arith.xori %127, %128 : vector<32x1xi1>
    %130 = vector.shape_cast %129 : vector<32x1xi1> to vector<32x1xi1>
    %131 = vector.broadcast %130 : vector<32x1xi1> to vector<32x128xi1>
    %132 = arith.select %131, %122, %123 : vector<32x128xi1>, vector<32x128xf32>
    %c4_i32_39 = arith.constant 4 : i32
    %133 = vector.broadcast %c4_i32_39 : i32 to vector<32x1xi32>
    %134 = arith.andi %72, %133 : vector<32x1xi32>
    %c0_i32_40 = arith.constant 0 : i32
    %135 = vector.broadcast %c0_i32_40 : i32 to vector<32x1xi32>
    %136 = arith.cmpi eq, %134, %135 : vector<32x1xi32>
    %137 = arith.xori %136, %127 : vector<32x1xi1>
    %cst_41 = arith.constant dense<true> : vector<32x1xi1>
    %138 = arith.xori %137, %cst_41 : vector<32x1xi1>
    %139 = arith.minimumf %121, %132 : vector<32x128xf32>
    %140 = arith.maximumf %121, %132 : vector<32x128xf32>
    %141 = vector.shape_cast %138 : vector<32x1xi1> to vector<32x1xi1>
    %142 = vector.broadcast %141 : vector<32x1xi1> to vector<32x128xi1>
    %143 = arith.select %142, %139, %140 : vector<32x128xi1>, vector<32x128xf32>
    %c28_i32 = arith.constant 28 : i32
    %144 = tpu.dynamic_rotate %143 by %c28_i32 dim 0 : vector<32x128xf32>, i32 -> vector<32x128xf32>
    %c4_i32_42 = arith.constant 4 : i32
    %145 = tpu.dynamic_rotate %143 by %c4_i32_42 dim 0 : vector<32x128xf32>, i32 -> vector<32x128xf32>
    %c4_i32_43 = arith.constant 4 : i32
    %146 = vector.broadcast %c4_i32_43 : i32 to vector<32x1xi32>
    %147 = arith.andi %72, %146 : vector<32x1xi32>
    %c0_i32_44 = arith.constant 0 : i32
    %148 = vector.broadcast %c0_i32_44 : i32 to vector<32x1xi32>
    %149 = arith.cmpi eq, %147, %148 : vector<32x1xi32>
    %150 = vector.broadcast %77 : vector<1x1xi1> to vector<32x1xi1>
    %151 = arith.xori %149, %150 : vector<32x1xi1>
    %152 = vector.shape_cast %151 : vector<32x1xi1> to vector<32x1xi1>
    %153 = vector.broadcast %152 : vector<32x1xi1> to vector<32x128xi1>
    %154 = arith.select %153, %144, %145 : vector<32x128xi1>, vector<32x128xf32>
    %c8_i32 = arith.constant 8 : i32
    %155 = vector.broadcast %c8_i32 : i32 to vector<32x1xi32>
    %156 = arith.andi %72, %155 : vector<32x1xi32>
    %c0_i32_45 = arith.constant 0 : i32
    %157 = vector.broadcast %c0_i32_45 : i32 to vector<32x1xi32>
    %158 = arith.cmpi eq, %156, %157 : vector<32x1xi32>
    %159 = arith.xori %158, %149 : vector<32x1xi1>
    %cst_46 = arith.constant dense<true> : vector<32x1xi1>
    %160 = arith.xori %159, %cst_46 : vector<32x1xi1>
    %161 = arith.minimumf %143, %154 : vector<32x128xf32>
    %162 = arith.maximumf %143, %154 : vector<32x128xf32>
    %163 = vector.shape_cast %160 : vector<32x1xi1> to vector<32x1xi1>
    %164 = vector.broadcast %163 : vector<32x1xi1> to vector<32x128xi1>
    %165 = arith.select %164, %161, %162 : vector<32x128xi1>, vector<32x128xf32>
    %c30_i32_47 = arith.constant 30 : i32
    %166 = tpu.dynamic_rotate %165 by %c30_i32_47 dim 0 : vector<32x128xf32>, i32 -> vector<32x128xf32>
    %c2_i32_48 = arith.constant 2 : i32
    %167 = tpu.dynamic_rotate %165 by %c2_i32_48 dim 0 : vector<32x128xf32>, i32 -> vector<32x128xf32>
    %c2_i32_49 = arith.constant 2 : i32
    %168 = vector.broadcast %c2_i32_49 : i32 to vector<32x1xi32>
    %169 = arith.andi %72, %168 : vector<32x1xi32>
    %c0_i32_50 = arith.constant 0 : i32
    %170 = vector.broadcast %c0_i32_50 : i32 to vector<32x1xi32>
    %171 = arith.cmpi eq, %169, %170 : vector<32x1xi32>
    %172 = vector.broadcast %77 : vector<1x1xi1> to vector<32x1xi1>
    %173 = arith.xori %171, %172 : vector<32x1xi1>
    %174 = vector.shape_cast %173 : vector<32x1xi1> to vector<32x1xi1>
    %175 = vector.broadcast %174 : vector<32x1xi1> to vector<32x128xi1>
    %176 = arith.select %175, %166, %167 : vector<32x128xi1>, vector<32x128xf32>
    %c8_i32_51 = arith.constant 8 : i32
    %177 = vector.broadcast %c8_i32_51 : i32 to vector<32x1xi32>
    %178 = arith.andi %72, %177 : vector<32x1xi32>
    %c0_i32_52 = arith.constant 0 : i32
    %179 = vector.broadcast %c0_i32_52 : i32 to vector<32x1xi32>
    %180 = arith.cmpi eq, %178, %179 : vector<32x1xi32>
    %181 = arith.xori %180, %171 : vector<32x1xi1>
    %cst_53 = arith.constant dense<true> : vector<32x1xi1>
    %182 = arith.xori %181, %cst_53 : vector<32x1xi1>
    %183 = arith.minimumf %165, %176 : vector<32x128xf32>
    %184 = arith.maximumf %165, %176 : vector<32x128xf32>
    %185 = vector.shape_cast %182 : vector<32x1xi1> to vector<32x1xi1>
    %186 = vector.broadcast %185 : vector<32x1xi1> to vector<32x128xi1>
    %187 = arith.select %186, %183, %184 : vector<32x128xi1>, vector<32x128xf32>
    %c31_i32_54 = arith.constant 31 : i32
    %188 = tpu.dynamic_rotate %187 by %c31_i32_54 dim 0 : vector<32x128xf32>, i32 -> vector<32x128xf32>
    %c1_i32_55 = arith.constant 1 : i32
    %189 = tpu.dynamic_rotate %187 by %c1_i32_55 dim 0 : vector<32x128xf32>, i32 -> vector<32x128xf32>
    %c1_i32_56 = arith.constant 1 : i32
    %190 = vector.broadcast %c1_i32_56 : i32 to vector<32x1xi32>
    %191 = arith.andi %72, %190 : vector<32x1xi32>
    %c0_i32_57 = arith.constant 0 : i32
    %192 = vector.broadcast %c0_i32_57 : i32 to vector<32x1xi32>
    %193 = arith.cmpi eq, %191, %192 : vector<32x1xi32>
    %194 = vector.broadcast %77 : vector<1x1xi1> to vector<32x1xi1>
    %195 = arith.xori %193, %194 : vector<32x1xi1>
    %196 = vector.shape_cast %195 : vector<32x1xi1> to vector<32x1xi1>
    %197 = vector.broadcast %196 : vector<32x1xi1> to vector<32x128xi1>
    %198 = arith.select %197, %188, %189 : vector<32x128xi1>, vector<32x128xf32>
    %c8_i32_58 = arith.constant 8 : i32
    %199 = vector.broadcast %c8_i32_58 : i32 to vector<32x1xi32>
    %200 = arith.andi %72, %199 : vector<32x1xi32>
    %c0_i32_59 = arith.constant 0 : i32
    %201 = vector.broadcast %c0_i32_59 : i32 to vector<32x1xi32>
    %202 = arith.cmpi eq, %200, %201 : vector<32x1xi32>
    %203 = arith.xori %202, %193 : vector<32x1xi1>
    %cst_60 = arith.constant dense<true> : vector<32x1xi1>
    %204 = arith.xori %203, %cst_60 : vector<32x1xi1>
    %205 = arith.minimumf %187, %198 : vector<32x128xf32>
    %206 = arith.maximumf %187, %198 : vector<32x128xf32>
    %207 = vector.shape_cast %204 : vector<32x1xi1> to vector<32x1xi1>
    %208 = vector.broadcast %207 : vector<32x1xi1> to vector<32x128xi1>
    %209 = arith.select %208, %205, %206 : vector<32x128xi1>, vector<32x128xf32>
    %c24_i32 = arith.constant 24 : i32
    %210 = tpu.dynamic_rotate %209 by %c24_i32 dim 0 : vector<32x128xf32>, i32 -> vector<32x128xf32>
    %c8_i32_61 = arith.constant 8 : i32
    %211 = tpu.dynamic_rotate %209 by %c8_i32_61 dim 0 : vector<32x128xf32>, i32 -> vector<32x128xf32>
    %c8_i32_62 = arith.constant 8 : i32
    %212 = vector.broadcast %c8_i32_62 : i32 to vector<32x1xi32>
    %213 = arith.andi %72, %212 : vector<32x1xi32>
    %c0_i32_63 = arith.constant 0 : i32
    %214 = vector.broadcast %c0_i32_63 : i32 to vector<32x1xi32>
    %215 = arith.cmpi eq, %213, %214 : vector<32x1xi32>
    %216 = vector.broadcast %77 : vector<1x1xi1> to vector<32x1xi1>
    %217 = arith.xori %215, %216 : vector<32x1xi1>
    %218 = vector.shape_cast %217 : vector<32x1xi1> to vector<32x1xi1>
    %219 = vector.broadcast %218 : vector<32x1xi1> to vector<32x128xi1>
    %220 = arith.select %219, %210, %211 : vector<32x128xi1>, vector<32x128xf32>
    %c16_i32 = arith.constant 16 : i32
    %221 = vector.broadcast %c16_i32 : i32 to vector<32x1xi32>
    %222 = arith.andi %72, %221 : vector<32x1xi32>
    %c0_i32_64 = arith.constant 0 : i32
    %223 = vector.broadcast %c0_i32_64 : i32 to vector<32x1xi32>
    %224 = arith.cmpi eq, %222, %223 : vector<32x1xi32>
    %225 = arith.xori %224, %215 : vector<32x1xi1>
    %cst_65 = arith.constant dense<true> : vector<32x1xi1>
    %226 = arith.xori %225, %cst_65 : vector<32x1xi1>
    %227 = arith.minimumf %209, %220 : vector<32x128xf32>
    %228 = arith.maximumf %209, %220 : vector<32x128xf32>
    %229 = vector.shape_cast %226 : vector<32x1xi1> to vector<32x1xi1>
    %230 = vector.broadcast %229 : vector<32x1xi1> to vector<32x128xi1>
    %231 = arith.select %230, %227, %228 : vector<32x128xi1>, vector<32x128xf32>
    %c28_i32_66 = arith.constant 28 : i32
    %232 = tpu.dynamic_rotate %231 by %c28_i32_66 dim 0 : vector<32x128xf32>, i32 -> vector<32x128xf32>
    %c4_i32_67 = arith.constant 4 : i32
    %233 = tpu.dynamic_rotate %231 by %c4_i32_67 dim 0 : vector<32x128xf32>, i32 -> vector<32x128xf32>
    %c4_i32_68 = arith.constant 4 : i32
    %234 = vector.broadcast %c4_i32_68 : i32 to vector<32x1xi32>
    %235 = arith.andi %72, %234 : vector<32x1xi32>
    %c0_i32_69 = arith.constant 0 : i32
    %236 = vector.broadcast %c0_i32_69 : i32 to vector<32x1xi32>
    %237 = arith.cmpi eq, %235, %236 : vector<32x1xi32>
    %238 = vector.broadcast %77 : vector<1x1xi1> to vector<32x1xi1>
    %239 = arith.xori %237, %238 : vector<32x1xi1>
    %240 = vector.shape_cast %239 : vector<32x1xi1> to vector<32x1xi1>
    %241 = vector.broadcast %240 : vector<32x1xi1> to vector<32x128xi1>
    %242 = arith.select %241, %232, %233 : vector<32x128xi1>, vector<32x128xf32>
    %c16_i32_70 = arith.constant 16 : i32
    %243 = vector.broadcast %c16_i32_70 : i32 to vector<32x1xi32>
    %244 = arith.andi %72, %243 : vector<32x1xi32>
    %c0_i32_71 = arith.constant 0 : i32
    %245 = vector.broadcast %c0_i32_71 : i32 to vector<32x1xi32>
    %246 = arith.cmpi eq, %244, %245 : vector<32x1xi32>
    %247 = arith.xori %246, %237 : vector<32x1xi1>
    %cst_72 = arith.constant dense<true> : vector<32x1xi1>
    %248 = arith.xori %247, %cst_72 : vector<32x1xi1>
    %249 = arith.minimumf %231, %242 : vector<32x128xf32>
    %250 = arith.maximumf %231, %242 : vector<32x128xf32>
    %251 = vector.shape_cast %248 : vector<32x1xi1> to vector<32x1xi1>
    %252 = vector.broadcast %251 : vector<32x1xi1> to vector<32x128xi1>
    %253 = arith.select %252, %249, %250 : vector<32x128xi1>, vector<32x128xf32>
    %c30_i32_73 = arith.constant 30 : i32
    %254 = tpu.dynamic_rotate %253 by %c30_i32_73 dim 0 : vector<32x128xf32>, i32 -> vector<32x128xf32>
    %c2_i32_74 = arith.constant 2 : i32
    %255 = tpu.dynamic_rotate %253 by %c2_i32_74 dim 0 : vector<32x128xf32>, i32 -> vector<32x128xf32>
    %c2_i32_75 = arith.constant 2 : i32
    %256 = vector.broadcast %c2_i32_75 : i32 to vector<32x1xi32>
    %257 = arith.andi %72, %256 : vector<32x1xi32>
    %c0_i32_76 = arith.constant 0 : i32
    %258 = vector.broadcast %c0_i32_76 : i32 to vector<32x1xi32>
    %259 = arith.cmpi eq, %257, %258 : vector<32x1xi32>
    %260 = vector.broadcast %77 : vector<1x1xi1> to vector<32x1xi1>
    %261 = arith.xori %259, %260 : vector<32x1xi1>
    %262 = vector.shape_cast %261 : vector<32x1xi1> to vector<32x1xi1>
    %263 = vector.broadcast %262 : vector<32x1xi1> to vector<32x128xi1>
    %264 = arith.select %263, %254, %255 : vector<32x128xi1>, vector<32x128xf32>
    %c16_i32_77 = arith.constant 16 : i32
    %265 = vector.broadcast %c16_i32_77 : i32 to vector<32x1xi32>
    %266 = arith.andi %72, %265 : vector<32x1xi32>
    %c0_i32_78 = arith.constant 0 : i32
    %267 = vector.broadcast %c0_i32_78 : i32 to vector<32x1xi32>
    %268 = arith.cmpi eq, %266, %267 : vector<32x1xi32>
    %269 = arith.xori %268, %259 : vector<32x1xi1>
    %cst_79 = arith.constant dense<true> : vector<32x1xi1>
    %270 = arith.xori %269, %cst_79 : vector<32x1xi1>
    %271 = arith.minimumf %253, %264 : vector<32x128xf32>
    %272 = arith.maximumf %253, %264 : vector<32x128xf32>
    %273 = vector.shape_cast %270 : vector<32x1xi1> to vector<32x1xi1>
    %274 = vector.broadcast %273 : vector<32x1xi1> to vector<32x128xi1>
    %275 = arith.select %274, %271, %272 : vector<32x128xi1>, vector<32x128xf32>
    %c31_i32_80 = arith.constant 31 : i32
    %276 = tpu.dynamic_rotate %275 by %c31_i32_80 dim 0 : vector<32x128xf32>, i32 -> vector<32x128xf32>
    %c1_i32_81 = arith.constant 1 : i32
    %277 = tpu.dynamic_rotate %275 by %c1_i32_81 dim 0 : vector<32x128xf32>, i32 -> vector<32x128xf32>
    %c1_i32_82 = arith.constant 1 : i32
    %278 = vector.broadcast %c1_i32_82 : i32 to vector<32x1xi32>
    %279 = arith.andi %72, %278 : vector<32x1xi32>
    %c0_i32_83 = arith.constant 0 : i32
    %280 = vector.broadcast %c0_i32_83 : i32 to vector<32x1xi32>
    %281 = arith.cmpi eq, %279, %280 : vector<32x1xi32>
    %282 = vector.broadcast %77 : vector<1x1xi1> to vector<32x1xi1>
    %283 = arith.xori %281, %282 : vector<32x1xi1>
    %284 = vector.shape_cast %283 : vector<32x1xi1> to vector<32x1xi1>
    %285 = vector.broadcast %284 : vector<32x1xi1> to vector<32x128xi1>
    %286 = arith.select %285, %276, %277 : vector<32x128xi1>, vector<32x128xf32>
    %c16_i32_84 = arith.constant 16 : i32
    %287 = vector.broadcast %c16_i32_84 : i32 to vector<32x1xi32>
    %288 = arith.andi %72, %287 : vector<32x1xi32>
    %c0_i32_85 = arith.constant 0 : i32
    %289 = vector.broadcast %c0_i32_85 : i32 to vector<32x1xi32>
    %290 = arith.cmpi eq, %288, %289 : vector<32x1xi32>
    %291 = arith.xori %290, %281 : vector<32x1xi1>
    %cst_86 = arith.constant dense<true> : vector<32x1xi1>
    %292 = arith.xori %291, %cst_86 : vector<32x1xi1>
    %293 = arith.minimumf %275, %286 : vector<32x128xf32>
    %294 = arith.maximumf %275, %286 : vector<32x128xf32>
    %295 = vector.shape_cast %292 : vector<32x1xi1> to vector<32x1xi1>
    %296 = vector.broadcast %295 : vector<32x1xi1> to vector<32x128xi1>
    %297 = arith.select %296, %293, %294 : vector<32x128xi1>, vector<32x128xf32>
    %c16_i32_87 = arith.constant 16 : i32
    %298 = tpu.dynamic_rotate %297 by %c16_i32_87 dim 0 : vector<32x128xf32>, i32 -> vector<32x128xf32>
    %c16_i32_88 = arith.constant 16 : i32
    %299 = tpu.dynamic_rotate %297 by %c16_i32_88 dim 0 : vector<32x128xf32>, i32 -> vector<32x128xf32>
    %c16_i32_89 = arith.constant 16 : i32
    %300 = vector.broadcast %c16_i32_89 : i32 to vector<32x1xi32>
    %301 = arith.andi %72, %300 : vector<32x1xi32>
    %c0_i32_90 = arith.constant 0 : i32
    %302 = vector.broadcast %c0_i32_90 : i32 to vector<32x1xi32>
    %303 = arith.cmpi eq, %301, %302 : vector<32x1xi32>
    %304 = vector.broadcast %77 : vector<1x1xi1> to vector<32x1xi1>
    %305 = arith.xori %303, %304 : vector<32x1xi1>
    %306 = vector.shape_cast %305 : vector<32x1xi1> to vector<32x1xi1>
    %307 = vector.broadcast %306 : vector<32x1xi1> to vector<32x128xi1>
    %308 = arith.select %307, %298, %299 : vector<32x128xi1>, vector<32x128xf32>
    %c32_i32 = arith.constant 32 : i32
    %309 = vector.broadcast %c32_i32 : i32 to vector<32x1xi32>
    %310 = arith.andi %72, %309 : vector<32x1xi32>
    %c0_i32_91 = arith.constant 0 : i32
    %311 = vector.broadcast %c0_i32_91 : i32 to vector<32x1xi32>
    %312 = arith.cmpi eq, %310, %311 : vector<32x1xi32>
    %313 = arith.xori %312, %303 : vector<32x1xi1>
    %cst_92 = arith.constant dense<true> : vector<32x1xi1>
    %314 = arith.xori %313, %cst_92 : vector<32x1xi1>
    %315 = arith.minimumf %297, %308 : vector<32x128xf32>
    %316 = arith.maximumf %297, %308 : vector<32x128xf32>
    %317 = vector.shape_cast %314 : vector<32x1xi1> to vector<32x1xi1>
    %318 = vector.broadcast %317 : vector<32x1xi1> to vector<32x128xi1>
    %319 = arith.select %318, %315, %316 : vector<32x128xi1>, vector<32x128xf32>
    %c24_i32_93 = arith.constant 24 : i32
    %320 = tpu.dynamic_rotate %319 by %c24_i32_93 dim 0 : vector<32x128xf32>, i32 -> vector<32x128xf32>
    %c8_i32_94 = arith.constant 8 : i32
    %321 = tpu.dynamic_rotate %319 by %c8_i32_94 dim 0 : vector<32x128xf32>, i32 -> vector<32x128xf32>
    %c8_i32_95 = arith.constant 8 : i32
    %322 = vector.broadcast %c8_i32_95 : i32 to vector<32x1xi32>
    %323 = arith.andi %72, %322 : vector<32x1xi32>
    %c0_i32_96 = arith.constant 0 : i32
    %324 = vector.broadcast %c0_i32_96 : i32 to vector<32x1xi32>
    %325 = arith.cmpi eq, %323, %324 : vector<32x1xi32>
    %326 = vector.broadcast %77 : vector<1x1xi1> to vector<32x1xi1>
    %327 = arith.xori %325, %326 : vector<32x1xi1>
    %328 = vector.shape_cast %327 : vector<32x1xi1> to vector<32x1xi1>
    %329 = vector.broadcast %328 : vector<32x1xi1> to vector<32x128xi1>
    %330 = arith.select %329, %320, %321 : vector<32x128xi1>, vector<32x128xf32>
    %c32_i32_97 = arith.constant 32 : i32
    %331 = vector.broadcast %c32_i32_97 : i32 to vector<32x1xi32>
    %332 = arith.andi %72, %331 : vector<32x1xi32>
    %c0_i32_98 = arith.constant 0 : i32
    %333 = vector.broadcast %c0_i32_98 : i32 to vector<32x1xi32>
    %334 = arith.cmpi eq, %332, %333 : vector<32x1xi32>
    %335 = arith.xori %334, %325 : vector<32x1xi1>
    %cst_99 = arith.constant dense<true> : vector<32x1xi1>
    %336 = arith.xori %335, %cst_99 : vector<32x1xi1>
    %337 = arith.minimumf %319, %330 : vector<32x128xf32>
    %338 = arith.maximumf %319, %330 : vector<32x128xf32>
    %339 = vector.shape_cast %336 : vector<32x1xi1> to vector<32x1xi1>
    %340 = vector.broadcast %339 : vector<32x1xi1> to vector<32x128xi1>
    %341 = arith.select %340, %337, %338 : vector<32x128xi1>, vector<32x128xf32>
    %c28_i32_100 = arith.constant 28 : i32
    %342 = tpu.dynamic_rotate %341 by %c28_i32_100 dim 0 : vector<32x128xf32>, i32 -> vector<32x128xf32>
    %c4_i32_101 = arith.constant 4 : i32
    %343 = tpu.dynamic_rotate %341 by %c4_i32_101 dim 0 : vector<32x128xf32>, i32 -> vector<32x128xf32>
    %c4_i32_102 = arith.constant 4 : i32
    %344 = vector.broadcast %c4_i32_102 : i32 to vector<32x1xi32>
    %345 = arith.andi %72, %344 : vector<32x1xi32>
    %c0_i32_103 = arith.constant 0 : i32
    %346 = vector.broadcast %c0_i32_103 : i32 to vector<32x1xi32>
    %347 = arith.cmpi eq, %345, %346 : vector<32x1xi32>
    %348 = vector.broadcast %77 : vector<1x1xi1> to vector<32x1xi1>
    %349 = arith.xori %347, %348 : vector<32x1xi1>
    %350 = vector.shape_cast %349 : vector<32x1xi1> to vector<32x1xi1>
    %351 = vector.broadcast %350 : vector<32x1xi1> to vector<32x128xi1>
    %352 = arith.select %351, %342, %343 : vector<32x128xi1>, vector<32x128xf32>
    %c32_i32_104 = arith.constant 32 : i32
    %353 = vector.broadcast %c32_i32_104 : i32 to vector<32x1xi32>
    %354 = arith.andi %72, %353 : vector<32x1xi32>
    %c0_i32_105 = arith.constant 0 : i32
    %355 = vector.broadcast %c0_i32_105 : i32 to vector<32x1xi32>
    %356 = arith.cmpi eq, %354, %355 : vector<32x1xi32>
    %357 = arith.xori %356, %347 : vector<32x1xi1>
    %cst_106 = arith.constant dense<true> : vector<32x1xi1>
    %358 = arith.xori %357, %cst_106 : vector<32x1xi1>
    %359 = arith.minimumf %341, %352 : vector<32x128xf32>
    %360 = arith.maximumf %341, %352 : vector<32x128xf32>
    %361 = vector.shape_cast %358 : vector<32x1xi1> to vector<32x1xi1>
    %362 = vector.broadcast %361 : vector<32x1xi1> to vector<32x128xi1>
    %363 = arith.select %362, %359, %360 : vector<32x128xi1>, vector<32x128xf32>
    %c30_i32_107 = arith.constant 30 : i32
    %364 = tpu.dynamic_rotate %363 by %c30_i32_107 dim 0 : vector<32x128xf32>, i32 -> vector<32x128xf32>
    %c2_i32_108 = arith.constant 2 : i32
    %365 = tpu.dynamic_rotate %363 by %c2_i32_108 dim 0 : vector<32x128xf32>, i32 -> vector<32x128xf32>
    %c2_i32_109 = arith.constant 2 : i32
    %366 = vector.broadcast %c2_i32_109 : i32 to vector<32x1xi32>
    %367 = arith.andi %72, %366 : vector<32x1xi32>
    %c0_i32_110 = arith.constant 0 : i32
    %368 = vector.broadcast %c0_i32_110 : i32 to vector<32x1xi32>
    %369 = arith.cmpi eq, %367, %368 : vector<32x1xi32>
    %370 = vector.broadcast %77 : vector<1x1xi1> to vector<32x1xi1>
    %371 = arith.xori %369, %370 : vector<32x1xi1>
    %372 = vector.shape_cast %371 : vector<32x1xi1> to vector<32x1xi1>
    %373 = vector.broadcast %372 : vector<32x1xi1> to vector<32x128xi1>
    %374 = arith.select %373, %364, %365 : vector<32x128xi1>, vector<32x128xf32>
    %c32_i32_111 = arith.constant 32 : i32
    %375 = vector.broadcast %c32_i32_111 : i32 to vector<32x1xi32>
    %376 = arith.andi %72, %375 : vector<32x1xi32>
    %c0_i32_112 = arith.constant 0 : i32
    %377 = vector.broadcast %c0_i32_112 : i32 to vector<32x1xi32>
    %378 = arith.cmpi eq, %376, %377 : vector<32x1xi32>
    %379 = arith.xori %378, %369 : vector<32x1xi1>
    %cst_113 = arith.constant dense<true> : vector<32x1xi1>
    %380 = arith.xori %379, %cst_113 : vector<32x1xi1>
    %381 = arith.minimumf %363, %374 : vector<32x128xf32>
    %382 = arith.maximumf %363, %374 : vector<32x128xf32>
    %383 = vector.shape_cast %380 : vector<32x1xi1> to vector<32x1xi1>
    %384 = vector.broadcast %383 : vector<32x1xi1> to vector<32x128xi1>
    %385 = arith.select %384, %381, %382 : vector<32x128xi1>, vector<32x128xf32>
    %c31_i32_114 = arith.constant 31 : i32
    %386 = tpu.dynamic_rotate %385 by %c31_i32_114 dim 0 : vector<32x128xf32>, i32 -> vector<32x128xf32>
    %c1_i32_115 = arith.constant 1 : i32
    %387 = tpu.dynamic_rotate %385 by %c1_i32_115 dim 0 : vector<32x128xf32>, i32 -> vector<32x128xf32>
    %c1_i32_116 = arith.constant 1 : i32
    %388 = vector.broadcast %c1_i32_116 : i32 to vector<32x1xi32>
    %389 = arith.andi %72, %388 : vector<32x1xi32>
    %c0_i32_117 = arith.constant 0 : i32
    %390 = vector.broadcast %c0_i32_117 : i32 to vector<32x1xi32>
    %391 = arith.cmpi eq, %389, %390 : vector<32x1xi32>
    %392 = vector.broadcast %77 : vector<1x1xi1> to vector<32x1xi1>
    %393 = arith.xori %391, %392 : vector<32x1xi1>
    %394 = vector.shape_cast %393 : vector<32x1xi1> to vector<32x1xi1>
    %395 = vector.broadcast %394 : vector<32x1xi1> to vector<32x128xi1>
    %396 = arith.select %395, %386, %387 : vector<32x128xi1>, vector<32x128xf32>
    %c32_i32_118 = arith.constant 32 : i32
    %397 = vector.broadcast %c32_i32_118 : i32 to vector<32x1xi32>
    %398 = arith.andi %72, %397 : vector<32x1xi32>
    %c0_i32_119 = arith.constant 0 : i32
    %399 = vector.broadcast %c0_i32_119 : i32 to vector<32x1xi32>
    %400 = arith.cmpi eq, %398, %399 : vector<32x1xi32>
    %401 = arith.xori %400, %391 : vector<32x1xi1>
    %cst_120 = arith.constant dense<true> : vector<32x1xi1>
    %402 = arith.xori %401, %cst_120 : vector<32x1xi1>
    %403 = arith.minimumf %385, %396 : vector<32x128xf32>
    %404 = arith.maximumf %385, %396 : vector<32x128xf32>
    %405 = vector.shape_cast %402 : vector<32x1xi1> to vector<32x1xi1>
    %406 = vector.broadcast %405 : vector<32x1xi1> to vector<32x128xi1>
    %407 = arith.select %406, %403, %404 : vector<32x128xi1>, vector<32x128xf32>
    %408 = vector.extract_strided_slice %407 {offsets = [0, 0], sizes = [24, 128], strides = [1, 1]} : vector<32x128xf32> to vector<24x128xf32>
    %c0_121 = arith.constant 0 : index
    %c0_122 = arith.constant 0 : index
    %c0_123 = arith.constant 0 : index
    %409 = vector.load %arg5[%c0_121, %c0_122, %c0_123] : memref<1x24x128xf32, #tpu.memory_space<vmem>>, vector<1x24x128xf32>
    %410 = vector.shape_cast %409 : vector<1x24x128xf32> to vector<24x128xf32>
    %411 = vector.shape_cast %408 : vector<24x128xf32> to vector<1x24x128xf32>
    tpu.vector_store %arg5[%c0_121, %c0_122, %c0_123], %411 {strides = array<i32>} : memref<1x24x128xf32, #tpu.memory_space<vmem>>, vector<1x24x128xf32>,
    return
  }
  func.func @transform_0(%arg0: i32, %arg1: i32) -> (i32, i32, i32) {
    %c0_i32 = arith.constant 0 : i32
    %c0_i32_0 = arith.constant 0 : i32
    return %arg0, %c0_i32, %arg1 : i32, i32, i32
  }
  func.func @transform_1(%arg0: i32, %arg1: i32) -> (i32, i32, i32) {
    %c0_i32 = arith.constant 0 : i32
    %c0_i32_0 = arith.constant 0 : i32
    %c0_i32_1 = arith.constant 0 : i32
    return %arg0, %c0_i32, %c0_i32_0 : i32, i32, i32
  }
  func.func @transform_2(%arg0: i32, %arg1: i32) -> (i32, i32, i32, i32) {
    %c0_i32 = arith.constant 0 : i32
    %c0_i32_0 = arith.constant 0 : i32
    %c0_i32_1 = arith.constant 0 : i32
    return %arg0, %arg1, %c0_i32, %c0_i32_0 : i32, i32, i32, i32
  }
  func.func @transform_3(%arg0: i32, %arg1: i32) -> (i32, i32, i32) {
    %c0_i32 = arith.constant 0 : i32
    %c0_i32_0 = arith.constant 0 : i32
    return %arg0, %c0_i32, %arg1 : i32, i32, i32
  }
}

</mosaic_0001>

<llo_original>
// kernel: tpu_custom_call.1
$region0: #{tpu_custom_call.1}
  #allocation0 [shape = 'u32[]', space=smem, size = 0x4, offset = 0x4, fixed_abs, tag = 'smem constant byte address 0x4 - core index']
  #allocation1 [shape = 'u32[144,128]{1,0:T(1,128)}', space=vmem, size = 0x12000, scoped, tag = 'internal scratch']
  %s0 = inlined_call_operand.hbm [shape: f32[2,8,256], index: 0, kind: input, shape index: {}]
  %s1 = inlined_call_operand.hbm [shape: f32[2,16,16], index: 1, kind: input, shape index: {}]
  %s2 = inlined_call_operand.hbm [shape: f32[2,2,2,2048], index: 2, kind: input, shape index: {}]
  %s3 = inlined_call_operand.hbm [shape: f32[2,24,256], index: 3, kind: output, shape index: {}]
  %s4 = sld [smem:[#allocation0]]
  $region57: #{tpu_custom_call.1} parent=0
    _
  %s6 = ssub.s32 1, %s4
  %s7 = scalar_select 0, %s6, %s4
  $region1: #{tpu_custom_call.1} parent=0
    #allocation2 [shape = 'u8[8192]{0}', space=vmem, size = 0x2000, scoped, tag = 'input window, operand 0']
    #allocation3 [shape = 's32[2]{0}', space=sflag, size = 0x8, scoped, tag = 'scoped memory for tpu_custom_call.1']
    #allocation4 [shape = 's32[2]{0}', space=sflag, size = 0x8, scoped, tag = 'scoped memory for tpu_custom_call.1']
    #allocation5 [shape = 'u8[16384]{0}', space=vmem, size = 0x4000, scoped, tag = 'input window, operand 1']
    #allocation6 [shape = 's32[2]{0}', space=sflag, size = 0x8, scoped, tag = 'scoped memory for tpu_custom_call.1']
    #allocation7 [shape = 'u8[32768]{0}', space=vmem, size = 0x8000, scoped, tag = 'input window, operand 2']
    #allocation8 [shape = 'u8[24576]{0}', space=vmem, size = 0x6000, scoped, tag = 'output window, operand 0']
    %8 = vsyncpa [#allocation3], 0
    %s9 = scalar_lea.sflag [#allocation3], 1
    %10 = vsyncpa %s9, 0
    %11 = vsyncpa [#allocation6], 0
    %s12 = scalar_lea.sflag [#allocation6], 1
    %13 = vsyncpa %s12, 0
    %14 = vsyncpa [#allocation4], 0
    %s15 = scalar_lea.sflag [#allocation4], 1
    %16 = vsyncpa %s15, 0
    loop: start=0, step=1, limit=6
    $region2: #{tpu_custom_call.1} parent=1 // loop_pre_header
      _
    $region3: #{tpu_custom_call.1} parent=1 // loop_header
      %s18 = sphi 0, %s22
      %p19 = scmp.ge.s32.totalorder %s18, 6
      %s25 = sphi 0, %s37
      %s26 = sphi 0, %s33
      %s27 = sphi 0, %s25
      %s28 = sphi 0, %s26
      %s29 = sphi 0, %s27
      %s30 = sphi 0, %s28
      %s42 = sphi 0, %s44
      %s45 = sphi 0, %s42
      %s46 = sphi 0, %s45
      %s62 = sphi 0, %s46
      %s68 = sphi 0, %s70
      %s71 = sphi 0, %s68
      %s72 = sphi 0, %s71
      %s88 = sphi 0, %s72
      %s96 = sphi 0, %s98
      %s99 = sphi 0, %s96
      %s100 = sphi 0, %s99
      %s116 = sphi 0, %s100
      %s124 = sphi 0, %s126
      %s127 = sphi 0, %s124
      %s128 = sphi 0, %s127
      %s144 = sphi 0, %s128
    $region4: #{tpu_custom_call.1} parent=1 // loop_header_branch
      %21 = sbr.rel (%p19) target = $region8
    $region5: #{tpu_custom_call.1} parent=1 // loop_body
      %s23 = ssub.s32 %s18, 1
      %s24 = ssub.s32 %s18, 2
      %s31 = sadd.s32 1, %s26
      %p32 = scmp.ge.s32.totalorder %s31, 2
      %s33 = scalar_select %p32, 0, %s31
      %s34 = sadd.s32 1, %s25
      %s35 = scalar_select %p32, %s34, %s25
      %p36 = scmp.ge.s32.totalorder %s35, 2
      %s37 = scalar_select %p36, 0, %s35
      %s38 = ssub.s32 %s25, %s37
      %s39 = ssub.s32 %s26, %s33
      %s40 = sor.u32 %s38, %s39
      %p41 = scmp.eq.s32.totalorder %s40, 0
      %s43 = sadd.s32 %s42, 1
      %s44 = scalar_select %p41, %s42, %s43
      %p47 = pneg %p41
      %p48 = scmp.eq.s32.totalorder %s18, 3
      %p49 = por %p47, %p48
      %p50 = scmp.ne.s32.totalorder %s42, %s45
      %p51 = scmp.eq.s32.totalorder %s18, 0
      %p52 = por %p50, %p51
      %p53 = scmp.ne.s32.totalorder %s42, %s45
      %p54 = scmp.eq.s32.totalorder %s23, 3
      %p55 = por %p53, %p54
      %p56 = scmp.ne.s32.totalorder %s45, %s46
      %p57 = scmp.eq.s32.totalorder %s23, 0
      %p58 = por %p56, %p57
      %p59 = scmp.ne.s32.totalorder %s45, %s46
      %p60 = scmp.eq.s32.totalorder %s24, 3
      %p61 = por %p59, %p60
      %p63 = scmp.ne.s32.totalorder %s46, %s62
      %p64 = scmp.eq.s32.totalorder %s24, 0
      %p65 = por %p63, %p64
      %s66 = ssub.s32 %s25, %s37
      %p67 = scmp.eq.s32.totalorder %s66, 0
      %s69 = sadd.s32 %s68, 1
      %s70 = scalar_select %p67, %s68, %s69
      %p73 = pneg %p67
      %p74 = scmp.eq.s32.totalorder %s18, 3
      %p75 = por %p73, %p74
      %p76 = scmp.ne.s32.totalorder %s68, %s71
      %p77 = scmp.eq.s32.totalorder %s18, 0
      %p78 = por %p76, %p77
      %p79 = scmp.ne.s32.totalorder %s68, %s71
      %p80 = scmp.eq.s32.totalorder %s23, 3
      %p81 = por %p79, %p80
      %p82 = scmp.ne.s32.totalorder %s71, %s72
      %p83 = scmp.eq.s32.totalorder %s23, 0
      %p84 = por %p82, %p83
      %p85 = scmp.ne.s32.totalorder %s71, %s72
      %p86 = scmp.eq.s32.totalorder %s24, 3
      %p87 = por %p85, %p86
      %p89 = scmp.ne.s32.totalorder %s72, %s88
      %p90 = scmp.eq.s32.totalorder %s24, 0
      %p91 = por %p89, %p90
      %s92 = ssub.s32 %s25, %s37
      %s93 = ssub.s32 %s26, %s33
      %s94 = sor.u32 %s92, %s93
      %p95 = scmp.eq.s32.totalorder %s94, 0
      %s97 = sadd.s32 %s96, 1
      %s98 = scalar_select %p95, %s96, %s97
      %p101 = pneg %p95
      %p102 = scmp.eq.s32.totalorder %s18, 3
      %p103 = por %p101, %p102
      %p104 = scmp.ne.s32.totalorder %s96, %s99
      %p105 = scmp.eq.s32.totalorder %s18, 0
      %p106 = por %p104, %p105
      %p107 = scmp.ne.s32.totalorder %s96, %s99
      %p108 = scmp.eq.s32.totalorder %s23, 3
      %p109 = por %p107, %p108
      %p110 = scmp.ne.s32.totalorder %s99, %s100
      %p111 = scmp.eq.s32.totalorder %s23, 0
      %p112 = por %p110, %p111
      %p113 = scmp.ne.s32.totalorder %s99, %s100
      %p114 = scmp.eq.s32.totalorder %s24, 3
      %p115 = por %p113, %p114
      %p117 = scmp.ne.s32.totalorder %s100, %s116
      %p118 = scmp.eq.s32.totalorder %s24, 0
      %p119 = por %p117, %p118
      %s120 = ssub.s32 %s25, %s37
      %s121 = ssub.s32 %s26, %s33
      %s122 = sor.u32 %s120, %s121
      %p123 = scmp.eq.s32.totalorder %s122, 0
      %s125 = sadd.s32 %s124, 1
      %s126 = scalar_select %p123, %s124, %s125
      %p129 = pneg %p123
      %p130 = scmp.eq.s32.totalorder %s18, 3
      %p131 = por %p129, %p130
      %p132 = scmp.ne.s32.totalorder %s124, %s127
      %p133 = scmp.eq.s32.totalorder %s18, 0
      %p134 = por %p132, %p133
      %p135 = scmp.ne.s32.totalorder %s124, %s127
      %p136 = scmp.eq.s32.totalorder %s23, 3
      %p137 = por %p135, %p136
      %p138 = scmp.ne.s32.totalorder %s127, %s128
      %p139 = scmp.eq.s32.totalorder %s23, 0
      %p140 = por %p138, %p139
      %p141 = scmp.ne.s32.totalorder %s127, %s128
      %p142 = scmp.eq.s32.totalorder %s24, 3
      %p143 = por %p141, %p142
      %p145 = scmp.ne.s32.totalorder %s128, %s144
      %p146 = scmp.eq.s32.totalorder %s24, 0
      %p147 = por %p145, %p146
      %p148 = scmp.le.s32.totalorder 1, %s18
      %p149 = scmp.lt.s32.totalorder %s18, 5
      %p150 = pnand %p148, %p149
      %p151 = pneg %p150
      // Predicated region
      $region9: #{tpu_custom_call.1} parent=5 // pred_check
        _
      $region10: #{tpu_custom_call.1} parent=5 // pred_check_branch
        %153 = sbr.rel (%p150) target = $region12
      $region11: #{tpu_custom_call.1} parent=5 // pred_region
        %s154 = ssub.s32 %s18, 1
      $region12: #{tpu_custom_call.1} parent=5 // pred_fallthru
        _
      %p155 = scmp.lt.s32.totalorder %s18, 4
      // Predicated region
      $region13: #{tpu_custom_call.1} parent=5 // pred_check
        %p156 = pneg %p155
      $region14: #{tpu_custom_call.1} parent=5 // pred_check_branch
        %158 = sbr.rel (%p156) target = $region16
      $region15: #{tpu_custom_call.1} parent=5 // pred_region
        // Predicated region
        $region17: #{tpu_custom_call.1} parent=15 // pred_check
          %p159 = pneg %p52
        $region18: #{tpu_custom_call.1} parent=15 // pred_check_branch
          %161 = sbr.rel (%p159) target = $region20
        $region19: #{tpu_custom_call.1} parent=15 // pred_region
          %s162 = sand.u32 %s42, 1
          %s163 = scalar_lea.sflag [#allocation3], %s162
          %s164 = sand.u32 %s42, 1
          %s165 = smul.addr %s164, 8
          %s166 = scalar_lea.vmem [#allocation2], %s165
          %s168 = ssub.s32 128, 128
          %169 = vsyncadd %s163, %s168
          %s170 = smul.addr %s25, 2
          %s171 = sadd.s32 %s26, %s170
          %s172 = smul.addr %s171, 128
          %s173 = scalar_lea.hbm %s0, %s172
          %s175 = sshll.u32 %s166, 4
          %s176 = int_to_ptr.vmem [resolvable:$true] %s175
          %178 = dma.hbm_to_vmem [thread:$0]  %s173, 128, %s176, %s163
        $region20: #{tpu_custom_call.1} parent=15 // pred_fallthru
          _
        // Predicated region
        $region21: #{tpu_custom_call.1} parent=15 // pred_check
          %p179 = pneg %p78
        $region22: #{tpu_custom_call.1} parent=15 // pred_check_branch
          %181 = sbr.rel (%p179) target = $region24
        $region23: #{tpu_custom_call.1} parent=15 // pred_region
          %s182 = sand.u32 %s18, 1
          %s183 = scalar_lea.sflag [#allocation6], %s182
          %s184 = sand.u32 %s68, 1
          %s185 = smul.addr %s184, 16
          %s186 = scalar_lea.vmem [#allocation5], %s185
          %s188 = ssub.s32 256, 256
          %189 = vsyncadd %s183, %s188
          %s190 = smul.addr %s25, 2
          %s191 = smul.addr %s190, 128
          %s192 = scalar_lea.hbm %s1, %s191
          %s193 = sshll.u32 %s186, 4
          %s194 = int_to_ptr.vmem [resolvable:$true] %s193
          %199 = dma.hbm_to_vmem [thread:$0]  %s192, 256, %s194, %s183, 128, 128, 8
        $region24: #{tpu_custom_call.1} parent=15 // pred_fallthru
          _
        // Predicated region
        $region25: #{tpu_custom_call.1} parent=15 // pred_check
          %p200 = pneg %p106
        $region26: #{tpu_custom_call.1} parent=15 // pred_check_branch
          %202 = sbr.rel (%p200) target = $region28
        $region27: #{tpu_custom_call.1} parent=15 // pred_region
          %s203 = sand.u32 %s18, 1
          %s204 = scalar_lea.sflag [#allocation6], %s203
          %s205 = sand.u32 %s96, 1
          %s206 = smul.addr %s205, 32
          %s207 = scalar_lea.vmem [#allocation7], %s206
          %s209 = ssub.s32 512, 512
          %210 = vsyncadd %s204, %s209
          %s211 = smul.addr %s26, 16
          %s212 = smul.addr %s25, 32
          %s213 = sadd.s32 %s211, %s212
          %s214 = smul.addr %s213, 32
          %s215 = scalar_lea.hbm %s2, %s214
          %s217 = sshll.u32 %s207, 4
          %s218 = int_to_ptr.vmem [resolvable:$true] %s217
          %220 = dma.hbm_to_vmem [thread:$0]  %s215, 512, %s218, %s204
        $region28: #{tpu_custom_call.1} parent=15 // pred_fallthru
          _
      $region16: #{tpu_custom_call.1} parent=5 // pred_fallthru
        _
      %p221 = scmp.le.s32.totalorder 1, %s18
      %p222 = scmp.lt.s32.totalorder %s18, 5
      %p223 = pnand %p221, %p222
      %p224 = pneg %p223
      // Predicated region
      $region29: #{tpu_custom_call.1} parent=5 // pred_check
        _
      $region30: #{tpu_custom_call.1} parent=5 // pred_check_branch
        %226 = sbr.rel (%p223) target = $region32
      $region31: #{tpu_custom_call.1} parent=5 // pred_region
        %s227 = ssub.s32 %s18, 1
        %s228 = sand.u32 %s45, 1
        %s229 = scalar_lea.sflag [#allocation3], %s228
        %s230 = sand.u32 %s45, 1
        %s231 = smul.addr %s230, 8
        %s232 = scalar_lea.vmem [#allocation2], %s231
        // Predicated region
        $region33: #{tpu_custom_call.1} parent=31 // pred_check
          %p233 = pneg %p58
        $region34: #{tpu_custom_call.1} parent=31 // pred_check_branch
          %235 = sbr.rel (%p233) target = $region36
        $region35: #{tpu_custom_call.1} parent=31 // pred_region
          %236 = dma.done %s229, 128
        $region36: #{tpu_custom_call.1} parent=31 // pred_fallthru
          _
        %s237 = sand.u32 %s23, 1
        %s238 = scalar_lea.sflag [#allocation6], %s237
        %s239 = sand.u32 %s71, 1
        %s240 = smul.addr %s239, 16
        %s241 = scalar_lea.vmem [#allocation5], %s240
        // Predicated region
        $region37: #{tpu_custom_call.1} parent=31 // pred_check
          %p242 = pneg %p84
        $region38: #{tpu_custom_call.1} parent=31 // pred_check_branch
          %244 = sbr.rel (%p242) target = $region40
        $region39: #{tpu_custom_call.1} parent=31 // pred_region
          %245 = dma.done %s238, 256
        $region40: #{tpu_custom_call.1} parent=31 // pred_fallthru
          _
        %s246 = sand.u32 %s23, 1
        %s247 = scalar_lea.sflag [#allocation6], %s246
        %s248 = sand.u32 %s99, 1
        %s249 = smul.addr %s248, 32
        %s250 = scalar_lea.vmem [#allocation7], %s249
        // Predicated region
        $region41: #{tpu_custom_call.1} parent=31 // pred_check
          %p251 = pneg %p112
        $region42: #{tpu_custom_call.1} parent=31 // pred_check_branch
          %253 = sbr.rel (%p251) target = $region44
        $region43: #{tpu_custom_call.1} parent=31 // pred_region
          %254 = dma.done %s247, 512
        $region44: #{tpu_custom_call.1} parent=31 // pred_fallthru
          _
        %s255 = sand.u32 %s45, 1
        %s256 = scalar_lea.sflag [#allocation3], %s255
        %s257 = sand.u32 %s45, 1
        %s258 = smul.addr %s257, 8
        %s259 = scalar_lea.vmem [#allocation2], %s258
        %p260 = pneg %p58
        %p261 = pneg %p55
        %s262 = sand.u32 %s23, 1
        %s263 = scalar_lea.sflag [#allocation6], %s262
        %s264 = sand.u32 %s71, 1
        %s265 = smul.addr %s264, 16
        %s266 = scalar_lea.vmem [#allocation5], %s265
        %p267 = pneg %p84
        %p268 = pneg %p81
        %s269 = sand.u32 %s23, 1
        %s270 = scalar_lea.sflag [#allocation6], %s269
        %s271 = sand.u32 %s99, 1
        %s272 = smul.addr %s271, 32
        %s273 = scalar_lea.vmem [#allocation7], %s272
        %p274 = pneg %p112
        %p275 = pneg %p109
        %p276 = pneg %p140
        %p277 = pneg %p137
        %s278 = sand.u32 %s127, 1
        %s279 = scalar_lea.sflag [#allocation4], %s278
        %s280 = sand.u32 %s127, 1
        %s281 = smul.addr %s280, 24
        %s282 = scalar_lea.vmem [#allocation8], %s281
        %v283 = vld [vmem:[%s250] sm:$0xff]
        %v284 = vld [vmem:[%s250 + $0x8] sm:$0xff]
        %v285 = vld [vmem:[%s250 + $0x10] sm:$0xff]
        %v286 = vld [vmem:[%s250 + $0x18] sm:$0xff]
        %v287 = vadd.f32 %v283, 1.0
        %v288 = vadd.f32 %v284, 1.0
        %v289 = vadd.f32 %v285, 1.0
        %v290 = vadd.f32 %v286, 1.0
        %v291 = vmul.f32 %v287, 8.0
        %v292 = vmul.f32 %v288, 8.0
        %v293 = vmul.f32 %v289, 8.0
        %v294 = vmul.f32 %v290, 8.0
        %v295 = vsub.f32 %v291, 0.5
        %v296 = vsub.f32 %v292, 0.5
        %v297 = vsub.f32 %v293, 0.5
        %v298 = vsub.f32 %v294, 0.5
        %v299 = vmax.f32 %v295, 0.0
        %v300 = vmax.f32 %v296, 0.0
        %v301 = vmax.f32 %v297, 0.0
        %v302 = vmax.f32 %v298, 0.0
        %v303 = vmin.f32 %v299, 15.0
        %v304 = vmin.f32 %v300, 15.0
        %v305 = vmin.f32 %v301, 15.0
        %v306 = vmin.f32 %v302, 15.0
        %v307 = vlaneseq
        %v308 = vshrl.u32 %v307, 7
        %v309 = vadd.s32 %v308, 8
        %v310 = vcvt.s32.f32 %v308
        %v311 = vcvt.s32.f32 %v309
        %v316 = vlaneseq
        %v317 = vshrl.u32 %v316, 7
        %v318 = vsub.s32 1, %v317
        %v319 = vrot.slane %v303, %v318
        %v320 = vlaneseq
        %v321 = vshrl.u32 %v320, 7
        %v322 = vsub.s32 3, %v321
        %v323 = vrot.slane %v303, %v322
        %v324 = vlaneseq
        %v325 = vshrl.u32 %v324, 7
        %v326 = vsub.s32 5, %v325
        %v327 = vrot.slane %v303, %v326
        %v328 = vlaneseq
        %v329 = vshrl.u32 %v328, 7
        %v330 = vsub.s32 7, %v329
        %v331 = vrot.slane %v303, %v330
        %v332 = vlaneseq
        %v333 = vshrl.u32 %v332, 7
        %v334 = vsub.s32 1, %v333
        %v335 = vrot.slane %v304, %v334
        %v336 = vlaneseq
        %v337 = vshrl.u32 %v336, 7
        %v338 = vsub.s32 3, %v337
        %v339 = vrot.slane %v304, %v338
        %v340 = vlaneseq
        %v341 = vshrl.u32 %v340, 7
        %v342 = vsub.s32 5, %v341
        %v343 = vrot.slane %v304, %v342
        %v344 = vlaneseq
        %v345 = vshrl.u32 %v344, 7
        %v346 = vsub.s32 7, %v345
        %v347 = vrot.slane %v304, %v346
        %v348 = vlaneseq
        %v349 = vshrl.u32 %v348, 7
        %v350 = vsub.s32 1, %v349
        %v351 = vrot.slane %v305, %v350
        %v352 = vlaneseq
        %v353 = vshrl.u32 %v352, 7
        %v354 = vsub.s32 3, %v353
        %v355 = vrot.slane %v305, %v354
        %v356 = vlaneseq
        %v357 = vshrl.u32 %v356, 7
        %v358 = vsub.s32 5, %v357
        %v359 = vrot.slane %v305, %v358
        %v360 = vlaneseq
        %v361 = vshrl.u32 %v360, 7
        %v362 = vsub.s32 7, %v361
        %v363 = vrot.slane %v305, %v362
        %v364 = vlaneseq
        %v365 = vshrl.u32 %v364, 7
        %v366 = vsub.s32 1, %v365
        %v367 = vrot.slane %v306, %v366
        %v368 = vlaneseq
        %v369 = vshrl.u32 %v368, 7
        %v370 = vsub.s32 3, %v369
        %v371 = vrot.slane %v306, %v370
        %v372 = vlaneseq
        %v373 = vshrl.u32 %v372, 7
        %v374 = vsub.s32 5, %v373
        %v375 = vrot.slane %v306, %v374
        %v376 = vlaneseq
        %v377 = vshrl.u32 %v376, 7
        %v378 = vsub.s32 7, %v377
        %v379 = vrot.slane %v306, %v378
        %v396 = vlaneseq
        %v397 = vshrl.u32 %v396, 7
        %v398 = vsub.s32 1, %v397
        %v399 = vrot.slane %v319, %v398
        %v400 = vlaneseq
        %v401 = vshrl.u32 %v400, 7
        %v402 = vsub.s32 1, %v401
        %v403 = vrot.slane %v323, %v402
        %v404 = vlaneseq
        %v405 = vshrl.u32 %v404, 7
        %v406 = vsub.s32 1, %v405
        %v407 = vrot.slane %v327, %v406
        %v408 = vlaneseq
        %v409 = vshrl.u32 %v408, 7
        %v410 = vsub.s32 1, %v409
        %v411 = vrot.slane %v331, %v410
        %v412 = vlaneseq
        %v413 = vshrl.u32 %v412, 7
        %v414 = vsub.s32 1, %v413
        %v415 = vrot.slane %v335, %v414
        %v416 = vlaneseq
        %v417 = vshrl.u32 %v416, 7
        %v418 = vsub.s32 1, %v417
        %v419 = vrot.slane %v339, %v418
        %v420 = vlaneseq
        %v421 = vshrl.u32 %v420, 7
        %v422 = vsub.s32 1, %v421
        %v423 = vrot.slane %v343, %v422
        %v424 = vlaneseq
        %v425 = vshrl.u32 %v424, 7
        %v426 = vsub.s32 1, %v425
        %v427 = vrot.slane %v347, %v426
        %v428 = vlaneseq
        %v429 = vshrl.u32 %v428, 7
        %v430 = vsub.s32 1, %v429
        %v431 = vrot.slane %v351, %v430
        %v432 = vlaneseq
        %v433 = vshrl.u32 %v432, 7
        %v434 = vsub.s32 1, %v433
        %v435 = vrot.slane %v355, %v434
        %v436 = vlaneseq
        %v437 = vshrl.u32 %v436, 7
        %v438 = vsub.s32 1, %v437
        %v439 = vrot.slane %v359, %v438
        %v440 = vlaneseq
        %v441 = vshrl.u32 %v440, 7
        %v442 = vsub.s32 1, %v441
        %v443 = vrot.slane %v363, %v442
        %v444 = vlaneseq
        %v445 = vshrl.u32 %v444, 7
        %v446 = vsub.s32 1, %v445
        %v447 = vrot.slane %v367, %v446
        %v448 = vlaneseq
        %v449 = vshrl.u32 %v448, 7
        %v450 = vsub.s32 1, %v449
        %v451 = vrot.slane %v371, %v450
        %v452 = vlaneseq
        %v453 = vshrl.u32 %v452, 7
        %v454 = vsub.s32 1, %v453
        %v455 = vrot.slane %v375, %v454
        %v456 = vlaneseq
        %v457 = vshrl.u32 %v456, 7
        %v458 = vsub.s32 1, %v457
        %v459 = vrot.slane %v379, %v458
        %v460 = vsub.f32 %v310, %v399
        %v461 = vsub.f32 %v310, %v403
        %v462 = vsub.f32 %v310, %v407
        %v463 = vsub.f32 %v310, %v411
        %v464 = vsub.f32 %v310, %v415
        %v465 = vsub.f32 %v310, %v419
        %v466 = vsub.f32 %v310, %v423
        %v467 = vsub.f32 %v310, %v427
        %v468 = vsub.f32 %v310, %v431
        %v469 = vsub.f32 %v310, %v435
        %v470 = vsub.f32 %v310, %v439
        %v471 = vsub.f32 %v310, %v443
        %v472 = vsub.f32 %v310, %v447
        %v473 = vsub.f32 %v310, %v451
        %v474 = vsub.f32 %v310, %v455
        %v475 = vsub.f32 %v310, %v459
        %v476 = vsub.f32 %v311, %v399
        %v477 = vsub.f32 %v311, %v403
        %v478 = vsub.f32 %v311, %v407
        %v479 = vsub.f32 %v311, %v411
        %v480 = vsub.f32 %v311, %v415
        %v481 = vsub.f32 %v311, %v419
        %v482 = vsub.f32 %v311, %v423
        %v483 = vsub.f32 %v311, %v427
        %v484 = vsub.f32 %v311, %v431
        %v485 = vsub.f32 %v311, %v435
        %v486 = vsub.f32 %v311, %v439
        %v487 = vsub.f32 %v311, %v443
        %v488 = vsub.f32 %v311, %v447
        %v489 = vsub.f32 %v311, %v451
        %v490 = vsub.f32 %v311, %v455
        %v491 = vsub.f32 %v311, %v459
        %v492 = vand.u32 2147483647, %v460
        %v493 = vand.u32 2147483647, %v461
        %v494 = vand.u32 2147483647, %v462
        %v495 = vand.u32 2147483647, %v463
        %v496 = vand.u32 2147483647, %v464
        %v497 = vand.u32 2147483647, %v465
        %v498 = vand.u32 2147483647, %v466
        %v499 = vand.u32 2147483647, %v467
        %v500 = vand.u32 2147483647, %v468
        %v501 = vand.u32 2147483647, %v469
        %v502 = vand.u32 2147483647, %v470
        %v503 = vand.u32 2147483647, %v471
        %v504 = vand.u32 2147483647, %v472
        %v505 = vand.u32 2147483647, %v473
        %v506 = vand.u32 2147483647, %v474
        %v507 = vand.u32 2147483647, %v475
        %v508 = vand.u32 2147483647, %v476
        %v509 = vand.u32 2147483647, %v477
        %v510 = vand.u32 2147483647, %v478
        %v511 = vand.u32 2147483647, %v479
        %v512 = vand.u32 2147483647, %v480
        %v513 = vand.u32 2147483647, %v481
        %v514 = vand.u32 2147483647, %v482
        %v515 = vand.u32 2147483647, %v483
        %v516 = vand.u32 2147483647, %v484
        %v517 = vand.u32 2147483647, %v485
        %v518 = vand.u32 2147483647, %v486
        %v519 = vand.u32 2147483647, %v487
        %v520 = vand.u32 2147483647, %v488
        %v521 = vand.u32 2147483647, %v489
        %v522 = vand.u32 2147483647, %v490
        %v523 = vand.u32 2147483647, %v491
        %v524 = vsub.f32 1.0, %v492
        %v525 = vsub.f32 1.0, %v493
        %v526 = vsub.f32 1.0, %v494
        %v527 = vsub.f32 1.0, %v495
        %v528 = vsub.f32 1.0, %v496
        %v529 = vsub.f32 1.0, %v497
        %v530 = vsub.f32 1.0, %v498
        %v531 = vsub.f32 1.0, %v499
        %v532 = vsub.f32 1.0, %v500
        %v533 = vsub.f32 1.0, %v501
        %v534 = vsub.f32 1.0, %v502
        %v535 = vsub.f32 1.0, %v503
        %v536 = vsub.f32 1.0, %v504
        %v537 = vsub.f32 1.0, %v505
        %v538 = vsub.f32 1.0, %v506
        %v539 = vsub.f32 1.0, %v507
        %v540 = vsub.f32 1.0, %v508
        %v541 = vsub.f32 1.0, %v509
        %v542 = vsub.f32 1.0, %v510
        %v543 = vsub.f32 1.0, %v511
        %v544 = vsub.f32 1.0, %v512
        %v545 = vsub.f32 1.0, %v513
        %v546 = vsub.f32 1.0, %v514
        %v547 = vsub.f32 1.0, %v515
        %v548 = vsub.f32 1.0, %v516
        %v549 = vsub.f32 1.0, %v517
        %v550 = vsub.f32 1.0, %v518
        %v551 = vsub.f32 1.0, %v519
        %v552 = vsub.f32 1.0, %v520
        %v553 = vsub.f32 1.0, %v521
        %v554 = vsub.f32 1.0, %v522
        %v555 = vsub.f32 1.0, %v523
        %v556 = vmax.f32 %v524, 0.0
        %v557 = vmax.f32 %v525, 0.0
        %v558 = vmax.f32 %v526, 0.0
        %v559 = vmax.f32 %v527, 0.0
        %v560 = vmax.f32 %v528, 0.0
        %v561 = vmax.f32 %v529, 0.0
        %v562 = vmax.f32 %v530, 0.0
        %v563 = vmax.f32 %v531, 0.0
        %v564 = vmax.f32 %v532, 0.0
        %v565 = vmax.f32 %v533, 0.0
        %v566 = vmax.f32 %v534, 0.0
        %v567 = vmax.f32 %v535, 0.0
        %v568 = vmax.f32 %v536, 0.0
        %v569 = vmax.f32 %v537, 0.0
        %v570 = vmax.f32 %v538, 0.0
        %v571 = vmax.f32 %v539, 0.0
        %v572 = vmax.f32 %v540, 0.0
        %v573 = vmax.f32 %v541, 0.0
        %v574 = vmax.f32 %v542, 0.0
        %v575 = vmax.f32 %v543, 0.0
        %v576 = vmax.f32 %v544, 0.0
        %v577 = vmax.f32 %v545, 0.0
        %v578 = vmax.f32 %v546, 0.0
        %v579 = vmax.f32 %v547, 0.0
        %v580 = vmax.f32 %v548, 0.0
        %v581 = vmax.f32 %v549, 0.0
        %v582 = vmax.f32 %v550, 0.0
        %v583 = vmax.f32 %v551, 0.0
        %v584 = vmax.f32 %v552, 0.0
        %v585 = vmax.f32 %v553, 0.0
        %v586 = vmax.f32 %v554, 0.0
        %v587 = vmax.f32 %v555, 0.0
        %v588 = vlaneseq
        %v589 = vshrl.u32 %v588, 7
        %v590 = vsub.s32 0, %v589
        %v591 = vrot.slane %v303, %v590
        %v592 = vlaneseq
        %v593 = vshrl.u32 %v592, 7
        %v594 = vsub.s32 2, %v593
        %v595 = vrot.slane %v303, %v594
        %v596 = vlaneseq
        %v597 = vshrl.u32 %v596, 7
        %v598 = vsub.s32 4, %v597
        %v599 = vrot.slane %v303, %v598
        %v600 = vlaneseq
        %v601 = vshrl.u32 %v600, 7
        %v602 = vsub.s32 6, %v601
        %v603 = vrot.slane %v303, %v602
        %v604 = vlaneseq
        %v605 = vshrl.u32 %v604, 7
        %v606 = vsub.s32 0, %v605
        %v607 = vrot.slane %v304, %v606
        %v608 = vlaneseq
        %v609 = vshrl.u32 %v608, 7
        %v610 = vsub.s32 2, %v609
        %v611 = vrot.slane %v304, %v610
        %v612 = vlaneseq
        %v613 = vshrl.u32 %v612, 7
        %v614 = vsub.s32 4, %v613
        %v615 = vrot.slane %v304, %v614
        %v616 = vlaneseq
        %v617 = vshrl.u32 %v616, 7
        %v618 = vsub.s32 6, %v617
        %v619 = vrot.slane %v304, %v618
        %v620 = vlaneseq
        %v621 = vshrl.u32 %v620, 7
        %v622 = vsub.s32 0, %v621
        %v623 = vrot.slane %v305, %v622
        %v624 = vlaneseq
        %v625 = vshrl.u32 %v624, 7
        %v626 = vsub.s32 2, %v625
        %v627 = vrot.slane %v305, %v626
        %v628 = vlaneseq
        %v629 = vshrl.u32 %v628, 7
        %v630 = vsub.s32 4, %v629
        %v631 = vrot.slane %v305, %v630
        %v632 = vlaneseq
        %v633 = vshrl.u32 %v632, 7
        %v634 = vsub.s32 6, %v633
        %v635 = vrot.slane %v305, %v634
        %v636 = vlaneseq
        %v637 = vshrl.u32 %v636, 7
        %v638 = vsub.s32 0, %v637
        %v639 = vrot.slane %v306, %v638
        %v640 = vlaneseq
        %v641 = vshrl.u32 %v640, 7
        %v642 = vsub.s32 2, %v641
        %v643 = vrot.slane %v306, %v642
        %v644 = vlaneseq
        %v645 = vshrl.u32 %v644, 7
        %v646 = vsub.s32 4, %v645
        %v647 = vrot.slane %v306, %v646
        %v648 = vlaneseq
        %v649 = vshrl.u32 %v648, 7
        %v650 = vsub.s32 6, %v649
        %v651 = vrot.slane %v306, %v650
        %v668 = vlaneseq
        %v669 = vshrl.u32 %v668, 7
        %v670 = vsub.s32 0, %v669
        %v671 = vrot.slane %v591, %v670
        %v672 = vlaneseq
        %v673 = vshrl.u32 %v672, 7
        %v674 = vsub.s32 0, %v673
        %v675 = vrot.slane %v595, %v674
        %v676 = vlaneseq
        %v677 = vshrl.u32 %v676, 7
        %v678 = vsub.s32 0, %v677
        %v679 = vrot.slane %v599, %v678
        %v680 = vlaneseq
        %v681 = vshrl.u32 %v680, 7
        %v682 = vsub.s32 0, %v681
        %v683 = vrot.slane %v603, %v682
        %v684 = vlaneseq
        %v685 = vshrl.u32 %v684, 7
        %v686 = vsub.s32 0, %v685
        %v687 = vrot.slane %v607, %v686
        %v688 = vlaneseq
        %v689 = vshrl.u32 %v688, 7
        %v690 = vsub.s32 0, %v689
        %v691 = vrot.slane %v611, %v690
        %v692 = vlaneseq
        %v693 = vshrl.u32 %v692, 7
        %v694 = vsub.s32 0, %v693
        %v695 = vrot.slane %v615, %v694
        %v696 = vlaneseq
        %v697 = vshrl.u32 %v696, 7
        %v698 = vsub.s32 0, %v697
        %v699 = vrot.slane %v619, %v698
        %v700 = vlaneseq
        %v701 = vshrl.u32 %v700, 7
        %v702 = vsub.s32 0, %v701
        %v703 = vrot.slane %v623, %v702
        %v704 = vlaneseq
        %v705 = vshrl.u32 %v704, 7
        %v706 = vsub.s32 0, %v705
        %v707 = vrot.slane %v627, %v706
        %v708 = vlaneseq
        %v709 = vshrl.u32 %v708, 7
        %v710 = vsub.s32 0, %v709
        %v711 = vrot.slane %v631, %v710
        %v712 = vlaneseq
        %v713 = vshrl.u32 %v712, 7
        %v714 = vsub.s32 0, %v713
        %v715 = vrot.slane %v635, %v714
        %v716 = vlaneseq
        %v717 = vshrl.u32 %v716, 7
        %v718 = vsub.s32 0, %v717
        %v719 = vrot.slane %v639, %v718
        %v720 = vlaneseq
        %v721 = vshrl.u32 %v720, 7
        %v722 = vsub.s32 0, %v721
        %v723 = vrot.slane %v643, %v722
        %v724 = vlaneseq
        %v725 = vshrl.u32 %v724, 7
        %v726 = vsub.s32 0, %v725
        %v727 = vrot.slane %v647, %v726
        %v728 = vlaneseq
        %v729 = vshrl.u32 %v728, 7
        %v730 = vsub.s32 0, %v729
        %v731 = vrot.slane %v651, %v730
        %v732 = vsub.f32 %v310, %v671
        %v733 = vsub.f32 %v310, %v675
        %v734 = vsub.f32 %v310, %v679
        %v735 = vsub.f32 %v310, %v683
        %v736 = vsub.f32 %v310, %v687
        %v737 = vsub.f32 %v310, %v691
        %v738 = vsub.f32 %v310, %v695
        %v739 = vsub.f32 %v310, %v699
        %v740 = vsub.f32 %v310, %v703
        %v741 = vsub.f32 %v310, %v707
        %v742 = vsub.f32 %v310, %v711
        %v743 = vsub.f32 %v310, %v715
        %v744 = vsub.f32 %v310, %v719
        %v745 = vsub.f32 %v310, %v723
        %v746 = vsub.f32 %v310, %v727
        %v747 = vsub.f32 %v310, %v731
        %v748 = vsub.f32 %v311, %v671
        %v749 = vsub.f32 %v311, %v675
        %v750 = vsub.f32 %v311, %v679
        %v751 = vsub.f32 %v311, %v683
        %v752 = vsub.f32 %v311, %v687
        %v753 = vsub.f32 %v311, %v691
        %v754 = vsub.f32 %v311, %v695
        %v755 = vsub.f32 %v311, %v699
        %v756 = vsub.f32 %v311, %v703
        %v757 = vsub.f32 %v311, %v707
        %v758 = vsub.f32 %v311, %v711
        %v759 = vsub.f32 %v311, %v715
        %v760 = vsub.f32 %v311, %v719
        %v761 = vsub.f32 %v311, %v723
        %v762 = vsub.f32 %v311, %v727
        %v763 = vsub.f32 %v311, %v731
        %v764 = vand.u32 2147483647, %v732
        %v765 = vand.u32 2147483647, %v733
        %v766 = vand.u32 2147483647, %v734
        %v767 = vand.u32 2147483647, %v735
        %v768 = vand.u32 2147483647, %v736
        %v769 = vand.u32 2147483647, %v737
        %v770 = vand.u32 2147483647, %v738
        %v771 = vand.u32 2147483647, %v739
        %v772 = vand.u32 2147483647, %v740
        %v773 = vand.u32 2147483647, %v741
        %v774 = vand.u32 2147483647, %v742
        %v775 = vand.u32 2147483647, %v743
        %v776 = vand.u32 2147483647, %v744
        %v777 = vand.u32 2147483647, %v745
        %v778 = vand.u32 2147483647, %v746
        %v779 = vand.u32 2147483647, %v747
        %v780 = vand.u32 2147483647, %v748
        %v781 = vand.u32 2147483647, %v749
        %v782 = vand.u32 2147483647, %v750
        %v783 = vand.u32 2147483647, %v751
        %v784 = vand.u32 2147483647, %v752
        %v785 = vand.u32 2147483647, %v753
        %v786 = vand.u32 2147483647, %v754
        %v787 = vand.u32 2147483647, %v755
        %v788 = vand.u32 2147483647, %v756
        %v789 = vand.u32 2147483647, %v757
        %v790 = vand.u32 2147483647, %v758
        %v791 = vand.u32 2147483647, %v759
        %v792 = vand.u32 2147483647, %v760
        %v793 = vand.u32 2147483647, %v761
        %v794 = vand.u32 2147483647, %v762
        %v795 = vand.u32 2147483647, %v763
        %v796 = vsub.f32 1.0, %v764
        %v797 = vsub.f32 1.0, %v765
        %v798 = vsub.f32 1.0, %v766
        %v799 = vsub.f32 1.0, %v767
        %v800 = vsub.f32 1.0, %v768
        %v801 = vsub.f32 1.0, %v769
        %v802 = vsub.f32 1.0, %v770
        %v803 = vsub.f32 1.0, %v771
        %v804 = vsub.f32 1.0, %v772
        %v805 = vsub.f32 1.0, %v773
        %v806 = vsub.f32 1.0, %v774
        %v807 = vsub.f32 1.0, %v775
        %v808 = vsub.f32 1.0, %v776
        %v809 = vsub.f32 1.0, %v777
        %v810 = vsub.f32 1.0, %v778
        %v811 = vsub.f32 1.0, %v779
        %v812 = vsub.f32 1.0, %v780
        %v813 = vsub.f32 1.0, %v781
        %v814 = vsub.f32 1.0, %v782
        %v815 = vsub.f32 1.0, %v783
        %v816 = vsub.f32 1.0, %v784
        %v817 = vsub.f32 1.0, %v785
        %v818 = vsub.f32 1.0, %v786
        %v819 = vsub.f32 1.0, %v787
        %v820 = vsub.f32 1.0, %v788
        %v821 = vsub.f32 1.0, %v789
        %v822 = vsub.f32 1.0, %v790
        %v823 = vsub.f32 1.0, %v791
        %v824 = vsub.f32 1.0, %v792
        %v825 = vsub.f32 1.0, %v793
        %v826 = vsub.f32 1.0, %v794
        %v827 = vsub.f32 1.0, %v795
        %v828 = vmax.f32 %v796, 0.0
        %v829 = vmax.f32 %v797, 0.0
        %v830 = vmax.f32 %v798, 0.0
        %v831 = vmax.f32 %v799, 0.0
        %v832 = vmax.f32 %v800, 0.0
        %v833 = vmax.f32 %v801, 0.0
        %v834 = vmax.f32 %v802, 0.0
        %v835 = vmax.f32 %v803, 0.0
        %v836 = vmax.f32 %v804, 0.0
        %v837 = vmax.f32 %v805, 0.0
        %v838 = vmax.f32 %v806, 0.0
        %v839 = vmax.f32 %v807, 0.0
        %v840 = vmax.f32 %v808, 0.0
        %v841 = vmax.f32 %v809, 0.0
        %v842 = vmax.f32 %v810, 0.0
        %v843 = vmax.f32 %v811, 0.0
        %v844 = vmax.f32 %v812, 0.0
        %v845 = vmax.f32 %v813, 0.0
        %v846 = vmax.f32 %v814, 0.0
        %v847 = vmax.f32 %v815, 0.0
        %v848 = vmax.f32 %v816, 0.0
        %v849 = vmax.f32 %v817, 0.0
        %v850 = vmax.f32 %v818, 0.0
        %v851 = vmax.f32 %v819, 0.0
        %v852 = vmax.f32 %v820, 0.0
        %v853 = vmax.f32 %v821, 0.0
        %v854 = vmax.f32 %v822, 0.0
        %v855 = vmax.f32 %v823, 0.0
        %v856 = vmax.f32 %v824, 0.0
        %v857 = vmax.f32 %v825, 0.0
        %v858 = vmax.f32 %v826, 0.0
        %v859 = vmax.f32 %v827, 0.0
        %v860 = vld [vmem:[%s241] sm:$0xff]
        %v861 = vld [vmem:[%s241 + $0x8] sm:$0xff]
        %vm862 = vcmask 130048
        %v864 = vsel %vm862, %v860, 0
        %v867 = vsel %vm862, %v861, 0
        %869 = vmatprep.subr.mxu0 0.0
        %870 = vmatpush1.msra.mxu0 0.0
        %871 = vmatprep.subr.mxu0 0.0
        %872 = vmatpush1.msra.mxu0 0.0
        %873 = vmatprep.subr.mxu0 0.0
        %874 = vmatpush1.msra.mxu0 0.0
        %875 = vmatprep.subr.mxu0 0.0
        %876 = vmatpush1.msra.mxu0 0.0
        %877 = vmatprep.subr.mxu0 0.0
        %878 = vmatpush1.msra.mxu0 0.0
        %879 = vmatprep.subr.mxu0 0.0
        %880 = vmatpush1.msra.mxu0 0.0
        %881 = vmatprep.subr.mxu0 0.0
        %882 = vmatpush1.msra.mxu0 0.0
        %883 = vmatprep.subr.mxu0 0.0
        %884 = vmatpush1.msra.mxu0 0.0
        %885 = vmatprep.subr.mxu0 0.0
        %886 = vmatpush1.msra.mxu0 0.0
        %887 = vmatprep.subr.mxu0 0.0
        %888 = vmatpush1.msra.mxu0 0.0
        %889 = vmatprep.subr.mxu0 0.0
        %890 = vmatpush1.msra.mxu0 0.0
        %891 = vmatprep.subr.mxu0 0.0
        %892 = vmatpush1.msra.mxu0 0.0
        %893 = vmatprep.subr.mxu0 0.0
        %894 = vmatpush1.msra.mxu0 0.0
        %895 = vmatprep.subr.mxu0 0.0
        %896 = vmatpush1.msra.mxu0 0.0
        %897 = vmatprep.subr.mxu0 %v573
        %898 = vmatpush1.msra.mxu0 %v572
        %899 = vmatprep.subr.mxu0 %v557
        %900 = vmatpush1.msra.mxu0 %v556
        %901 = vmatprep.subr.mxu0 0.0
        %902 = vmatpush2.msra.mxu0 0.0
        %903 = vmatprep.subr.mxu0 0.0
        %904 = vmatpush2.msra.mxu0 0.0
        %905 = vmatprep.subr.mxu0 0.0
        %906 = vmatpush2.msra.mxu0 0.0
        %907 = vmatprep.subr.mxu0 0.0
        %908 = vmatpush2.msra.mxu0 0.0
        %909 = vmatprep.subr.mxu0 0.0
        %910 = vmatpush2.msra.mxu0 0.0
        %911 = vmatprep.subr.mxu0 0.0
        %912 = vmatpush2.msra.mxu0 0.0
        %913 = vmatprep.subr.mxu0 0.0
        %914 = vmatpush2.msra.mxu0 0.0
        %915 = vmatprep.subr.mxu0 0.0
        %916 = vmatpush2.msra.mxu0 0.0
        %917 = vmatprep.subr.mxu0 0.0
        %918 = vmatpush2.msra.mxu0 0.0
        %919 = vmatprep.subr.mxu0 0.0
        %920 = vmatpush2.msra.mxu0 0.0
        %921 = vmatprep.subr.mxu0 0.0
        %922 = vmatpush2.msra.mxu0 0.0
        %923 = vmatprep.subr.mxu0 0.0
        %924 = vmatpush2.msra.mxu0 0.0
        %925 = vmatprep.subr.mxu0 0.0
        %926 = vmatpush2.msra.mxu0 0.0
        %927 = vmatprep.subr.mxu0 0.0
        %928 = vmatpush2.msra.mxu0 0.0
        %929 = vmatprep.subr.mxu0 0.0
        %930 = vmatpush2.msra.mxu0 0.0
        %931 = vmatprep.subr.mxu0 0.0
        %932 = vmatpush2.msra.mxu0 0.0
        %933 = vmatprep.mubr.f32.mxu0 0.0
        %934 = vmatmul.mubr.f32.gmra.mxu0 %v864
        %v935 = vpop.f32.mrf.mxu0
        %v936 = vadd.f32 0.0, %v935
        %v937 = vpop.f32.mrf.mxu0
        %v938 = vadd.f32 0.0, %v937
        %939 = vmatprep.mubr.f32.mxu0 0.0
        %940 = vmatmul.mubr.f32.gmra.mxu0 %v867
        %v941 = vpop.f32.mrf.mxu0
        %v942 = vadd.f32 0.0, %v941
        %v943 = vpop.f32.mrf.mxu0
        %v944 = vadd.f32 0.0, %v943
        %945 = vdwg.mxu0
        %946 = vmatprep.subr.mxu0 0.0
        %947 = vmatpush1.msra.mxu0 0.0
        %948 = vmatprep.subr.mxu0 0.0
        %949 = vmatpush1.msra.mxu0 0.0
        %950 = vmatprep.subr.mxu0 0.0
        %951 = vmatpush1.msra.mxu0 0.0
        %952 = vmatprep.subr.mxu0 0.0
        %953 = vmatpush1.msra.mxu0 0.0
        %954 = vmatprep.subr.mxu0 0.0
        %955 = vmatpush1.msra.mxu0 0.0
        %956 = vmatprep.subr.mxu0 0.0
        %957 = vmatpush1.msra.mxu0 0.0
        %958 = vmatprep.subr.mxu0 0.0
        %959 = vmatpush1.msra.mxu0 0.0
        %960 = vmatprep.subr.mxu0 0.0
        %961 = vmatpush1.msra.mxu0 0.0
        %962 = vmatprep.subr.mxu0 0.0
        %963 = vmatpush1.msra.mxu0 0.0
        %964 = vmatprep.subr.mxu0 0.0
        %965 = vmatpush1.msra.mxu0 0.0
        %966 = vmatprep.subr.mxu0 0.0
        %967 = vmatpush1.msra.mxu0 0.0
        %968 = vmatprep.subr.mxu0 0.0
        %969 = vmatpush1.msra.mxu0 0.0
        %970 = vmatprep.subr.mxu0 0.0
        %971 = vmatpush1.msra.mxu0 0.0
        %972 = vmatprep.subr.mxu0 0.0
        %973 = vmatpush1.msra.mxu0 0.0
        %974 = vmatprep.subr.mxu0 %v575
        %975 = vmatpush1.msra.mxu0 %v574
        %976 = vmatprep.subr.mxu0 %v559
        %977 = vmatpush1.msra.mxu0 %v558
        %978 = vmatprep.subr.mxu0 0.0
        %979 = vmatpush2.msra.mxu0 0.0
        %980 = vmatprep.subr.mxu0 0.0
        %981 = vmatpush2.msra.mxu0 0.0
        %982 = vmatprep.subr.mxu0 0.0
        %983 = vmatpush2.msra.mxu0 0.0
        %984 = vmatprep.subr.mxu0 0.0
        %985 = vmatpush2.msra.mxu0 0.0
        %986 = vmatprep.subr.mxu0 0.0
        %987 = vmatpush2.msra.mxu0 0.0
        %988 = vmatprep.subr.mxu0 0.0
        %989 = vmatpush2.msra.mxu0 0.0
        %990 = vmatprep.subr.mxu0 0.0
        %991 = vmatpush2.msra.mxu0 0.0
        %992 = vmatprep.subr.mxu0 0.0
        %993 = vmatpush2.msra.mxu0 0.0
        %994 = vmatprep.subr.mxu0 0.0
        %995 = vmatpush2.msra.mxu0 0.0
        %996 = vmatprep.subr.mxu0 0.0
        %997 = vmatpush2.msra.mxu0 0.0
        %998 = vmatprep.subr.mxu0 0.0
        %999 = vmatpush2.msra.mxu0 0.0
        %1000 = vmatprep.subr.mxu0 0.0
        %1001 = vmatpush2.msra.mxu0 0.0
        %1002 = vmatprep.subr.mxu0 0.0
        %1003 = vmatpush2.msra.mxu0 0.0
        %1004 = vmatprep.subr.mxu0 0.0
        %1005 = vmatpush2.msra.mxu0 0.0
        %1006 = vmatprep.subr.mxu0 0.0
        %1007 = vmatpush2.msra.mxu0 0.0
        %1008 = vmatprep.subr.mxu0 0.0
        %1009 = vmatpush2.msra.mxu0 0.0
        %1010 = vmatprep.mubr.f32.mxu0 0.0
        %1011 = vmatmul.mubr.f32.gmra.mxu0 %v864
        %v1012 = vpop.f32.mrf.mxu0
        %v1013 = vadd.f32 0.0, %v1012
        %v1014 = vpop.f32.mrf.mxu0
        %v1015 = vadd.f32 0.0, %v1014
        %1016 = vmatprep.mubr.f32.mxu0 0.0
        %1017 = vmatmul.mubr.f32.gmra.mxu0 %v867
        %v1018 = vpop.f32.mrf.mxu0
        %v1019 = vadd.f32 0.0, %v1018
        %v1020 = vpop.f32.mrf.mxu0
        %v1021 = vadd.f32 0.0, %v1020
        %1022 = vdwg.mxu0
        %1023 = vmatprep.subr.mxu0 0.0
        %1024 = vmatpush1.msra.mxu0 0.0
        %1025 = vmatprep.subr.mxu0 0.0
        %1026 = vmatpush1.msra.mxu0 0.0
        %1027 = vmatprep.subr.mxu0 0.0
        %1028 = vmatpush1.msra.mxu0 0.0
        %1029 = vmatprep.subr.mxu0 0.0
        %1030 = vmatpush1.msra.mxu0 0.0
        %1031 = vmatprep.subr.mxu0 0.0
        %1032 = vmatpush1.msra.mxu0 0.0
        %1033 = vmatprep.subr.mxu0 0.0
        %1034 = vmatpush1.msra.mxu0 0.0
        %1035 = vmatprep.subr.mxu0 0.0
        %1036 = vmatpush1.msra.mxu0 0.0
        %1037 = vmatprep.subr.mxu0 0.0
        %1038 = vmatpush1.msra.mxu0 0.0
        %1039 = vmatprep.subr.mxu0 0.0
        %1040 = vmatpush1.msra.mxu0 0.0
        %1041 = vmatprep.subr.mxu0 0.0
        %1042 = vmatpush1.msra.mxu0 0.0
        %1043 = vmatprep.subr.mxu0 0.0
        %1044 = vmatpush1.msra.mxu0 0.0
        %1045 = vmatprep.subr.mxu0 0.0
        %1046 = vmatpush1.msra.mxu0 0.0
        %1047 = vmatprep.subr.mxu0 0.0
        %1048 = vmatpush1.msra.mxu0 0.0
        %1049 = vmatprep.subr.mxu0 0.0
        %1050 = vmatpush1.msra.mxu0 0.0
        %1051 = vmatprep.subr.mxu0 %v577
        %1052 = vmatpush1.msra.mxu0 %v576
        %1053 = vmatprep.subr.mxu0 %v561
        %1054 = vmatpush1.msra.mxu0 %v560
        %1055 = vmatprep.subr.mxu0 0.0
        %1056 = vmatpush2.msra.mxu0 0.0
        %1057 = vmatprep.subr.mxu0 0.0
        %1058 = vmatpush2.msra.mxu0 0.0
        %1059 = vmatprep.subr.mxu0 0.0
        %1060 = vmatpush2.msra.mxu0 0.0
        %1061 = vmatprep.subr.mxu0 0.0
        %1062 = vmatpush2.msra.mxu0 0.0
        %1063 = vmatprep.subr.mxu0 0.0
        %1064 = vmatpush2.msra.mxu0 0.0
        %1065 = vmatprep.subr.mxu0 0.0
        %1066 = vmatpush2.msra.mxu0 0.0
        %1067 = vmatprep.subr.mxu0 0.0
        %1068 = vmatpush2.msra.mxu0 0.0
        %1069 = vmatprep.subr.mxu0 0.0
        %1070 = vmatpush2.msra.mxu0 0.0
        %1071 = vmatprep.subr.mxu0 0.0
        %1072 = vmatpush2.msra.mxu0 0.0
        %1073 = vmatprep.subr.mxu0 0.0
        %1074 = vmatpush2.msra.mxu0 0.0
        %1075 = vmatprep.subr.mxu0 0.0
        %1076 = vmatpush2.msra.mxu0 0.0
        %1077 = vmatprep.subr.mxu0 0.0
        %1078 = vmatpush2.msra.mxu0 0.0
        %1079 = vmatprep.subr.mxu0 0.0
        %1080 = vmatpush2.msra.mxu0 0.0
        %1081 = vmatprep.subr.mxu0 0.0
        %1082 = vmatpush2.msra.mxu0 0.0
        %1083 = vmatprep.subr.mxu0 0.0
        %1084 = vmatpush2.msra.mxu0 0.0
        %1085 = vmatprep.subr.mxu0 0.0
        %1086 = vmatpush2.msra.mxu0 0.0
        %1087 = vmatprep.mubr.f32.mxu0 0.0
        %1088 = vmatmul.mubr.f32.gmra.mxu0 %v864
        %v1089 = vpop.f32.mrf.mxu0
        %v1090 = vadd.f32 0.0, %v1089
        %v1091 = vpop.f32.mrf.mxu0
        %v1092 = vadd.f32 0.0, %v1091
        %1093 = vmatprep.mubr.f32.mxu0 0.0
        %1094 = vmatmul.mubr.f32.gmra.mxu0 %v867
        %v1095 = vpop.f32.mrf.mxu0
        %v1096 = vadd.f32 0.0, %v1095
        %v1097 = vpop.f32.mrf.mxu0
        %v1098 = vadd.f32 0.0, %v1097
        %1099 = vdwg.mxu0
        %1100 = vmatprep.subr.mxu0 0.0
        %1101 = vmatpush1.msra.mxu0 0.0
        %1102 = vmatprep.subr.mxu0 0.0
        %1103 = vmatpush1.msra.mxu0 0.0
        %1104 = vmatprep.subr.mxu0 0.0
        %1105 = vmatpush1.msra.mxu0 0.0
        %1106 = vmatprep.subr.mxu0 0.0
        %1107 = vmatpush1.msra.mxu0 0.0
        %1108 = vmatprep.subr.mxu0 0.0
        %1109 = vmatpush1.msra.mxu0 0.0
        %1110 = vmatprep.subr.mxu0 0.0
        %1111 = vmatpush1.msra.mxu0 0.0
        %1112 = vmatprep.subr.mxu0 0.0
        %1113 = vmatpush1.msra.mxu0 0.0
        %1114 = vmatprep.subr.mxu0 0.0
        %1115 = vmatpush1.msra.mxu0 0.0
        %1116 = vmatprep.subr.mxu0 0.0
        %1117 = vmatpush1.msra.mxu0 0.0
        %1118 = vmatprep.subr.mxu0 0.0
        %1119 = vmatpush1.msra.mxu0 0.0
        %1120 = vmatprep.subr.mxu0 0.0
        %1121 = vmatpush1.msra.mxu0 0.0
        %1122 = vmatprep.subr.mxu0 0.0
        %1123 = vmatpush1.msra.mxu0 0.0
        %1124 = vmatprep.subr.mxu0 0.0
        %1125 = vmatpush1.msra.mxu0 0.0
        %1126 = vmatprep.subr.mxu0 0.0
        %1127 = vmatpush1.msra.mxu0 0.0
        %1128 = vmatprep.subr.mxu0 %v579
        %1129 = vmatpush1.msra.mxu0 %v578
        %1130 = vmatprep.subr.mxu0 %v563
        %1131 = vmatpush1.msra.mxu0 %v562
        %1132 = vmatprep.subr.mxu0 0.0
        %1133 = vmatpush2.msra.mxu0 0.0
        %1134 = vmatprep.subr.mxu0 0.0
        %1135 = vmatpush2.msra.mxu0 0.0
        %1136 = vmatprep.subr.mxu0 0.0
        %1137 = vmatpush2.msra.mxu0 0.0
        %1138 = vmatprep.subr.mxu0 0.0
        %1139 = vmatpush2.msra.mxu0 0.0
        %1140 = vmatprep.subr.mxu0 0.0
        %1141 = vmatpush2.msra.mxu0 0.0
        %1142 = vmatprep.subr.mxu0 0.0
        %1143 = vmatpush2.msra.mxu0 0.0
        %1144 = vmatprep.subr.mxu0 0.0
        %1145 = vmatpush2.msra.mxu0 0.0
        %1146 = vmatprep.subr.mxu0 0.0
        %1147 = vmatpush2.msra.mxu0 0.0
        %1148 = vmatprep.subr.mxu0 0.0
        %1149 = vmatpush2.msra.mxu0 0.0
        %1150 = vmatprep.subr.mxu0 0.0
        %1151 = vmatpush2.msra.mxu0 0.0
        %1152 = vmatprep.subr.mxu0 0.0
        %1153 = vmatpush2.msra.mxu0 0.0
        %1154 = vmatprep.subr.mxu0 0.0
        %1155 = vmatpush2.msra.mxu0 0.0
        %1156 = vmatprep.subr.mxu0 0.0
        %1157 = vmatpush2.msra.mxu0 0.0
        %1158 = vmatprep.subr.mxu0 0.0
        %1159 = vmatpush2.msra.mxu0 0.0
        %1160 = vmatprep.subr.mxu0 0.0
        %1161 = vmatpush2.msra.mxu0 0.0
        %1162 = vmatprep.subr.mxu0 0.0
        %1163 = vmatpush2.msra.mxu0 0.0
        %1164 = vmatprep.mubr.f32.mxu0 0.0
        %1165 = vmatmul.mubr.f32.gmra.mxu0 %v864
        %v1166 = vpop.f32.mrf.mxu0
        %v1167 = vadd.f32 0.0, %v1166
        %v1168 = vpop.f32.mrf.mxu0
        %v1169 = vadd.f32 0.0, %v1168
        %1170 = vmatprep.mubr.f32.mxu0 0.0
        %1171 = vmatmul.mubr.f32.gmra.mxu0 %v867
        %v1172 = vpop.f32.mrf.mxu0
        %v1173 = vadd.f32 0.0, %v1172
        %v1174 = vpop.f32.mrf.mxu0
        %v1175 = vadd.f32 0.0, %v1174
        %1176 = vdwg.mxu0
        %1177 = vmatprep.subr.mxu0 0.0
        %1178 = vmatpush1.msra.mxu0 0.0
        %1179 = vmatprep.subr.mxu0 0.0
        %1180 = vmatpush1.msra.mxu0 0.0
        %1181 = vmatprep.subr.mxu0 0.0
        %1182 = vmatpush1.msra.mxu0 0.0
        %1183 = vmatprep.subr.mxu0 0.0
        %1184 = vmatpush1.msra.mxu0 0.0
        %1185 = vmatprep.subr.mxu0 0.0
        %1186 = vmatpush1.msra.mxu0 0.0
        %1187 = vmatprep.subr.mxu0 0.0
        %1188 = vmatpush1.msra.mxu0 0.0
        %1189 = vmatprep.subr.mxu0 0.0
        %1190 = vmatpush1.msra.mxu0 0.0
        %1191 = vmatprep.subr.mxu0 0.0
        %1192 = vmatpush1.msra.mxu0 0.0
        %1193 = vmatprep.subr.mxu0 0.0
        %1194 = vmatpush1.msra.mxu0 0.0
        %1195 = vmatprep.subr.mxu0 0.0
        %1196 = vmatpush1.msra.mxu0 0.0
        %1197 = vmatprep.subr.mxu0 0.0
        %1198 = vmatpush1.msra.mxu0 0.0
        %1199 = vmatprep.subr.mxu0 0.0
        %1200 = vmatpush1.msra.mxu0 0.0
        %1201 = vmatprep.subr.mxu0 0.0
        %1202 = vmatpush1.msra.mxu0 0.0
        %1203 = vmatprep.subr.mxu0 0.0
        %1204 = vmatpush1.msra.mxu0 0.0
        %1205 = vmatprep.subr.mxu0 %v581
        %1206 = vmatpush1.msra.mxu0 %v580
        %1207 = vmatprep.subr.mxu0 %v565
        %1208 = vmatpush1.msra.mxu0 %v564
        %1209 = vmatprep.subr.mxu0 0.0
        %1210 = vmatpush2.msra.mxu0 0.0
        %1211 = vmatprep.subr.mxu0 0.0
        %1212 = vmatpush2.msra.mxu0 0.0
        %1213 = vmatprep.subr.mxu0 0.0
        %1214 = vmatpush2.msra.mxu0 0.0
        %1215 = vmatprep.subr.mxu0 0.0
        %1216 = vmatpush2.msra.mxu0 0.0
        %1217 = vmatprep.subr.mxu0 0.0
        %1218 = vmatpush2.msra.mxu0 0.0
        %1219 = vmatprep.subr.mxu0 0.0
        %1220 = vmatpush2.msra.mxu0 0.0
        %1221 = vmatprep.subr.mxu0 0.0
        %1222 = vmatpush2.msra.mxu0 0.0
        %1223 = vmatprep.subr.mxu0 0.0
        %1224 = vmatpush2.msra.mxu0 0.0
        %1225 = vmatprep.subr.mxu0 0.0
        %1226 = vmatpush2.msra.mxu0 0.0
        %1227 = vmatprep.subr.mxu0 0.0
        %1228 = vmatpush2.msra.mxu0 0.0
        %1229 = vmatprep.subr.mxu0 0.0
        %1230 = vmatpush2.msra.mxu0 0.0
        %1231 = vmatprep.subr.mxu0 0.0
        %1232 = vmatpush2.msra.mxu0 0.0
        %1233 = vmatprep.subr.mxu0 0.0
        %1234 = vmatpush2.msra.mxu0 0.0
        %1235 = vmatprep.subr.mxu0 0.0
        %1236 = vmatpush2.msra.mxu0 0.0
        %1237 = vmatprep.subr.mxu0 0.0
        %1238 = vmatpush2.msra.mxu0 0.0
        %1239 = vmatprep.subr.mxu0 0.0
        %1240 = vmatpush2.msra.mxu0 0.0
        %1241 = vmatprep.mubr.f32.mxu0 0.0
        %1242 = vmatmul.mubr.f32.gmra.mxu0 %v864
        %v1243 = vpop.f32.mrf.mxu0
        %v1244 = vadd.f32 0.0, %v1243
        %v1245 = vpop.f32.mrf.mxu0
        %v1246 = vadd.f32 0.0, %v1245
        %1247 = vmatprep.mubr.f32.mxu0 0.0
        %1248 = vmatmul.mubr.f32.gmra.mxu0 %v867
        %v1249 = vpop.f32.mrf.mxu0
        %v1250 = vadd.f32 0.0, %v1249
        %v1251 = vpop.f32.mrf.mxu0
        %v1252 = vadd.f32 0.0, %v1251
        %1253 = vdwg.mxu0
        %1254 = vmatprep.subr.mxu0 0.0
        %1255 = vmatpush1.msra.mxu0 0.0
        %1256 = vmatprep.subr.mxu0 0.0
        %1257 = vmatpush1.msra.mxu0 0.0
        %1258 = vmatprep.subr.mxu0 0.0
        %1259 = vmatpush1.msra.mxu0 0.0
        %1260 = vmatprep.subr.mxu0 0.0
        %1261 = vmatpush1.msra.mxu0 0.0
        %1262 = vmatprep.subr.mxu0 0.0
        %1263 = vmatpush1.msra.mxu0 0.0
        %1264 = vmatprep.subr.mxu0 0.0
        %1265 = vmatpush1.msra.mxu0 0.0
        %1266 = vmatprep.subr.mxu0 0.0
        %1267 = vmatpush1.msra.mxu0 0.0
        %1268 = vmatprep.subr.mxu0 0.0
        %1269 = vmatpush1.msra.mxu0 0.0
        %1270 = vmatprep.subr.mxu0 0.0
        %1271 = vmatpush1.msra.mxu0 0.0
        %1272 = vmatprep.subr.mxu0 0.0
        %1273 = vmatpush1.msra.mxu0 0.0
        %1274 = vmatprep.subr.mxu0 0.0
        %1275 = vmatpush1.msra.mxu0 0.0
        %1276 = vmatprep.subr.mxu0 0.0
        %1277 = vmatpush1.msra.mxu0 0.0
        %1278 = vmatprep.subr.mxu0 0.0
        %1279 = vmatpush1.msra.mxu0 0.0
        %1280 = vmatprep.subr.mxu0 0.0
        %1281 = vmatpush1.msra.mxu0 0.0
        %1282 = vmatprep.subr.mxu0 %v583
        %1283 = vmatpush1.msra.mxu0 %v582
        %1284 = vmatprep.subr.mxu0 %v567
        %1285 = vmatpush1.msra.mxu0 %v566
        %1286 = vmatprep.subr.mxu0 0.0
        %1287 = vmatpush2.msra.mxu0 0.0
        %1288 = vmatprep.subr.mxu0 0.0
        %1289 = vmatpush2.msra.mxu0 0.0
        %1290 = vmatprep.subr.mxu0 0.0
        %1291 = vmatpush2.msra.mxu0 0.0
        %1292 = vmatprep.subr.mxu0 0.0
        %1293 = vmatpush2.msra.mxu0 0.0
        %1294 = vmatprep.subr.mxu0 0.0
        %1295 = vmatpush2.msra.mxu0 0.0
        %1296 = vmatprep.subr.mxu0 0.0
        %1297 = vmatpush2.msra.mxu0 0.0
        %1298 = vmatprep.subr.mxu0 0.0
        %1299 = vmatpush2.msra.mxu0 0.0
        %1300 = vmatprep.subr.mxu0 0.0
        %1301 = vmatpush2.msra.mxu0 0.0
        %1302 = vmatprep.subr.mxu0 0.0
        %1303 = vmatpush2.msra.mxu0 0.0
        %1304 = vmatprep.subr.mxu0 0.0
        %1305 = vmatpush2.msra.mxu0 0.0
        %1306 = vmatprep.subr.mxu0 0.0
        %1307 = vmatpush2.msra.mxu0 0.0
        %1308 = vmatprep.subr.mxu0 0.0
        %1309 = vmatpush2.msra.mxu0 0.0
        %1310 = vmatprep.subr.mxu0 0.0
        %1311 = vmatpush2.msra.mxu0 0.0
        %1312 = vmatprep.subr.mxu0 0.0
        %1313 = vmatpush2.msra.mxu0 0.0
        %1314 = vmatprep.subr.mxu0 0.0
        %1315 = vmatpush2.msra.mxu0 0.0
        %1316 = vmatprep.subr.mxu0 0.0
        %1317 = vmatpush2.msra.mxu0 0.0
        %1318 = vmatprep.mubr.f32.mxu0 0.0
        %1319 = vmatmul.mubr.f32.gmra.mxu0 %v864
        %v1320 = vpop.f32.mrf.mxu0
        %v1321 = vadd.f32 0.0, %v1320
        %v1322 = vpop.f32.mrf.mxu0
        %v1323 = vadd.f32 0.0, %v1322
        %1324 = vmatprep.mubr.f32.mxu0 0.0
        %1325 = vmatmul.mubr.f32.gmra.mxu0 %v867
        %v1326 = vpop.f32.mrf.mxu0
        %v1327 = vadd.f32 0.0, %v1326
        %v1328 = vpop.f32.mrf.mxu0
        %v1329 = vadd.f32 0.0, %v1328
        %1330 = vdwg.mxu0
        %1331 = vmatprep.subr.mxu0 0.0
        %1332 = vmatpush1.msra.mxu0 0.0
        %1333 = vmatprep.subr.mxu0 0.0
        %1334 = vmatpush1.msra.mxu0 0.0
        %1335 = vmatprep.subr.mxu0 0.0
        %1336 = vmatpush1.msra.mxu0 0.0
        %1337 = vmatprep.subr.mxu0 0.0
        %1338 = vmatpush1.msra.mxu0 0.0
        %1339 = vmatprep.subr.mxu0 0.0
        %1340 = vmatpush1.msra.mxu0 0.0
        %1341 = vmatprep.subr.mxu0 0.0
        %1342 = vmatpush1.msra.mxu0 0.0
        %1343 = vmatprep.subr.mxu0 0.0
        %1344 = vmatpush1.msra.mxu0 0.0
        %1345 = vmatprep.subr.mxu0 0.0
        %1346 = vmatpush1.msra.mxu0 0.0
        %1347 = vmatprep.subr.mxu0 0.0
        %1348 = vmatpush1.msra.mxu0 0.0
        %1349 = vmatprep.subr.mxu0 0.0
        %1350 = vmatpush1.msra.mxu0 0.0
        %1351 = vmatprep.subr.mxu0 0.0
        %1352 = vmatpush1.msra.mxu0 0.0
        %1353 = vmatprep.subr.mxu0 0.0
        %1354 = vmatpush1.msra.mxu0 0.0
        %1355 = vmatprep.subr.mxu0 0.0
        %1356 = vmatpush1.msra.mxu0 0.0
        %1357 = vmatprep.subr.mxu0 0.0
        %1358 = vmatpush1.msra.mxu0 0.0
        %1359 = vmatprep.subr.mxu0 %v585
        %1360 = vmatpush1.msra.mxu0 %v584
        %1361 = vmatprep.subr.mxu0 %v569
        %1362 = vmatpush1.msra.mxu0 %v568
        %1363 = vmatprep.subr.mxu0 0.0
        %1364 = vmatpush2.msra.mxu0 0.0
        %1365 = vmatprep.subr.mxu0 0.0
        %1366 = vmatpush2.msra.mxu0 0.0
        %1367 = vmatprep.subr.mxu0 0.0
        %1368 = vmatpush2.msra.mxu0 0.0
        %1369 = vmatprep.subr.mxu0 0.0
        %1370 = vmatpush2.msra.mxu0 0.0
        %1371 = vmatprep.subr.mxu0 0.0
        %1372 = vmatpush2.msra.mxu0 0.0
        %1373 = vmatprep.subr.mxu0 0.0
        %1374 = vmatpush2.msra.mxu0 0.0
        %1375 = vmatprep.subr.mxu0 0.0
        %1376 = vmatpush2.msra.mxu0 0.0
        %1377 = vmatprep.subr.mxu0 0.0
        %1378 = vmatpush2.msra.mxu0 0.0
        %1379 = vmatprep.subr.mxu0 0.0
        %1380 = vmatpush2.msra.mxu0 0.0
        %1381 = vmatprep.subr.mxu0 0.0
        %1382 = vmatpush2.msra.mxu0 0.0
        %1383 = vmatprep.subr.mxu0 0.0
        %1384 = vmatpush2.msra.mxu0 0.0
        %1385 = vmatprep.subr.mxu0 0.0
        %1386 = vmatpush2.msra.mxu0 0.0
        %1387 = vmatprep.subr.mxu0 0.0
        %1388 = vmatpush2.msra.mxu0 0.0
        %1389 = vmatprep.subr.mxu0 0.0
        %1390 = vmatpush2.msra.mxu0 0.0
        %1391 = vmatprep.subr.mxu0 0.0
        %1392 = vmatpush2.msra.mxu0 0.0
        %1393 = vmatprep.subr.mxu0 0.0
        %1394 = vmatpush2.msra.mxu0 0.0
        %1395 = vmatprep.mubr.f32.mxu0 0.0
        %1396 = vmatmul.mubr.f32.gmra.mxu0 %v864
        %v1397 = vpop.f32.mrf.mxu0
        %v1398 = vadd.f32 0.0, %v1397
        %v1399 = vpop.f32.mrf.mxu0
        %v1400 = vadd.f32 0.0, %v1399
        %1401 = vmatprep.mubr.f32.mxu0 0.0
        %1402 = vmatmul.mubr.f32.gmra.mxu0 %v867
        %v1403 = vpop.f32.mrf.mxu0
        %v1404 = vadd.f32 0.0, %v1403
        %v1405 = vpop.f32.mrf.mxu0
        %v1406 = vadd.f32 0.0, %v1405
        %1407 = vdwg.mxu0
        %1408 = vmatprep.subr.mxu0 0.0
        %1409 = vmatpush1.msra.mxu0 0.0
        %1410 = vmatprep.subr.mxu0 0.0
        %1411 = vmatpush1.msra.mxu0 0.0
        %1412 = vmatprep.subr.mxu0 0.0
        %1413 = vmatpush1.msra.mxu0 0.0
        %1414 = vmatprep.subr.mxu0 0.0
        %1415 = vmatpush1.msra.mxu0 0.0
        %1416 = vmatprep.subr.mxu0 0.0
        %1417 = vmatpush1.msra.mxu0 0.0
        %1418 = vmatprep.subr.mxu0 0.0
        %1419 = vmatpush1.msra.mxu0 0.0
        %1420 = vmatprep.subr.mxu0 0.0
        %1421 = vmatpush1.msra.mxu0 0.0
        %1422 = vmatprep.subr.mxu0 0.0
        %1423 = vmatpush1.msra.mxu0 0.0
        %1424 = vmatprep.subr.mxu0 0.0
        %1425 = vmatpush1.msra.mxu0 0.0
        %1426 = vmatprep.subr.mxu0 0.0
        %1427 = vmatpush1.msra.mxu0 0.0
        %1428 = vmatprep.subr.mxu0 0.0
        %1429 = vmatpush1.msra.mxu0 0.0
        %1430 = vmatprep.subr.mxu0 0.0
        %1431 = vmatpush1.msra.mxu0 0.0
        %1432 = vmatprep.subr.mxu0 0.0
        %1433 = vmatpush1.msra.mxu0 0.0
        %1434 = vmatprep.subr.mxu0 0.0
        %1435 = vmatpush1.msra.mxu0 0.0
        %1436 = vmatprep.subr.mxu0 %v587
        %1437 = vmatpush1.msra.mxu0 %v586
        %1438 = vmatprep.subr.mxu0 %v571
        %1439 = vmatpush1.msra.mxu0 %v570
        %1440 = vmatprep.subr.mxu0 0.0
        %1441 = vmatpush2.msra.mxu0 0.0
        %1442 = vmatprep.subr.mxu0 0.0
        %1443 = vmatpush2.msra.mxu0 0.0
        %1444 = vmatprep.subr.mxu0 0.0
        %1445 = vmatpush2.msra.mxu0 0.0
        %1446 = vmatprep.subr.mxu0 0.0
        %1447 = vmatpush2.msra.mxu0 0.0
        %1448 = vmatprep.subr.mxu0 0.0
        %1449 = vmatpush2.msra.mxu0 0.0
        %1450 = vmatprep.subr.mxu0 0.0
        %1451 = vmatpush2.msra.mxu0 0.0
        %1452 = vmatprep.subr.mxu0 0.0
        %1453 = vmatpush2.msra.mxu0 0.0
        %1454 = vmatprep.subr.mxu0 0.0
        %1455 = vmatpush2.msra.mxu0 0.0
        %1456 = vmatprep.subr.mxu0 0.0
        %1457 = vmatpush2.msra.mxu0 0.0
        %1458 = vmatprep.subr.mxu0 0.0
        %1459 = vmatpush2.msra.mxu0 0.0
        %1460 = vmatprep.subr.mxu0 0.0
        %1461 = vmatpush2.msra.mxu0 0.0
        %1462 = vmatprep.subr.mxu0 0.0
        %1463 = vmatpush2.msra.mxu0 0.0
        %1464 = vmatprep.subr.mxu0 0.0
        %1465 = vmatpush2.msra.mxu0 0.0
        %1466 = vmatprep.subr.mxu0 0.0
        %1467 = vmatpush2.msra.mxu0 0.0
        %1468 = vmatprep.subr.mxu0 0.0
        %1469 = vmatpush2.msra.mxu0 0.0
        %1470 = vmatprep.subr.mxu0 0.0
        %1471 = vmatpush2.msra.mxu0 0.0
        %1472 = vmatprep.mubr.f32.mxu0 0.0
        %1473 = vmatmul.mubr.f32.gmra.mxu0 %v864
        %v1474 = vpop.f32.mrf.mxu0
        %v1475 = vadd.f32 0.0, %v1474
        %v1476 = vpop.f32.mrf.mxu0
        %v1477 = vadd.f32 0.0, %v1476
        %1478 = vmatprep.mubr.f32.mxu0 0.0
        %1479 = vmatmul.mubr.f32.gmra.mxu0 %v867
        %v1480 = vpop.f32.mrf.mxu0
        %v1481 = vadd.f32 0.0, %v1480
        %v1482 = vpop.f32.mrf.mxu0
        %v1483 = vadd.f32 0.0, %v1482
        %1484 = vdwg.mxu0
        %v1485 = vmul.f32 %v828, %v936
        %v1486 = vmul.f32 %v829, %v938
        %v1487 = vmul.f32 %v830, %v1013
        %v1488 = vmul.f32 %v831, %v1015
        %v1489 = vmul.f32 %v832, %v1090
        %v1490 = vmul.f32 %v833, %v1092
        %v1491 = vmul.f32 %v834, %v1167
        %v1492 = vmul.f32 %v835, %v1169
        %v1493 = vmul.f32 %v836, %v1244
        %v1494 = vmul.f32 %v837, %v1246
        %v1495 = vmul.f32 %v838, %v1321
        %v1496 = vmul.f32 %v839, %v1323
        %v1497 = vmul.f32 %v840, %v1398
        %v1498 = vmul.f32 %v841, %v1400
        %v1499 = vmul.f32 %v842, %v1475
        %v1500 = vmul.f32 %v843, %v1477
        %v1501 = vmul.f32 %v844, %v942
        %v1502 = vmul.f32 %v845, %v944
        %v1503 = vmul.f32 %v846, %v1019
        %v1504 = vmul.f32 %v847, %v1021
        %v1505 = vmul.f32 %v848, %v1096
        %v1506 = vmul.f32 %v849, %v1098
        %v1507 = vmul.f32 %v850, %v1173
        %v1508 = vmul.f32 %v851, %v1175
        %v1509 = vmul.f32 %v852, %v1250
        %v1510 = vmul.f32 %v853, %v1252
        %v1511 = vmul.f32 %v854, %v1327
        %v1512 = vmul.f32 %v855, %v1329
        %v1513 = vmul.f32 %v856, %v1404
        %v1514 = vmul.f32 %v857, %v1406
        %v1515 = vmul.f32 %v858, %v1481
        %v1516 = vmul.f32 %v859, %v1483
        %v1517 = vadd.f32 %v1485, %v1501
        %v1518 = vrot.slane %v1517, 4
        %v1519 = vadd.f32 %v1517, %v1518
        %v1520 = vrot.slane %v1519, 2
        %v1521 = vadd.f32 %v1519, %v1520
        %v1522 = vrot.slane %v1521, 1
        %v1523 = vadd.f32 %v1521, %v1522
        %v1524 = vadd.f32 %v1486, %v1502
        %v1525 = vrot.slane %v1524, 4
        %v1526 = vadd.f32 %v1524, %v1525
        %v1527 = vrot.slane %v1526, 2
        %v1528 = vadd.f32 %v1526, %v1527
        %v1529 = vrot.slane %v1528, 1
        %v1530 = vadd.f32 %v1528, %v1529
        %v1531 = vadd.f32 %v1487, %v1503
        %v1532 = vrot.slane %v1531, 4
        %v1533 = vadd.f32 %v1531, %v1532
        %v1534 = vrot.slane %v1533, 2
        %v1535 = vadd.f32 %v1533, %v1534
        %v1536 = vrot.slane %v1535, 1
        %v1537 = vadd.f32 %v1535, %v1536
        %v1538 = vadd.f32 %v1488, %v1504
        %v1539 = vrot.slane %v1538, 4
        %v1540 = vadd.f32 %v1538, %v1539
        %v1541 = vrot.slane %v1540, 2
        %v1542 = vadd.f32 %v1540, %v1541
        %v1543 = vrot.slane %v1542, 1
        %v1544 = vadd.f32 %v1542, %v1543
        %v1545 = vadd.f32 %v1489, %v1505
        %v1546 = vrot.slane %v1545, 4
        %v1547 = vadd.f32 %v1545, %v1546
        %v1548 = vrot.slane %v1547, 2
        %v1549 = vadd.f32 %v1547, %v1548
        %v1550 = vrot.slane %v1549, 1
        %v1551 = vadd.f32 %v1549, %v1550
        %v1552 = vadd.f32 %v1490, %v1506
        %v1553 = vrot.slane %v1552, 4
        %v1554 = vadd.f32 %v1552, %v1553
        %v1555 = vrot.slane %v1554, 2
        %v1556 = vadd.f32 %v1554, %v1555
        %v1557 = vrot.slane %v1556, 1
        %v1558 = vadd.f32 %v1556, %v1557
        %v1559 = vadd.f32 %v1491, %v1507
        %v1560 = vrot.slane %v1559, 4
        %v1561 = vadd.f32 %v1559, %v1560
        %v1562 = vrot.slane %v1561, 2
        %v1563 = vadd.f32 %v1561, %v1562
        %v1564 = vrot.slane %v1563, 1
        %v1565 = vadd.f32 %v1563, %v1564
        %v1566 = vadd.f32 %v1492, %v1508
        %v1567 = vrot.slane %v1566, 4
        %v1568 = vadd.f32 %v1566, %v1567
        %v1569 = vrot.slane %v1568, 2
        %v1570 = vadd.f32 %v1568, %v1569
        %v1571 = vrot.slane %v1570, 1
        %v1572 = vadd.f32 %v1570, %v1571
        %v1573 = vadd.f32 %v1493, %v1509
        %v1574 = vrot.slane %v1573, 4
        %v1575 = vadd.f32 %v1573, %v1574
        %v1576 = vrot.slane %v1575, 2
        %v1577 = vadd.f32 %v1575, %v1576
        %v1578 = vrot.slane %v1577, 1
        %v1579 = vadd.f32 %v1577, %v1578
        %v1580 = vadd.f32 %v1494, %v1510
        %v1581 = vrot.slane %v1580, 4
        %v1582 = vadd.f32 %v1580, %v1581
        %v1583 = vrot.slane %v1582, 2
        %v1584 = vadd.f32 %v1582, %v1583
        %v1585 = vrot.slane %v1584, 1
        %v1586 = vadd.f32 %v1584, %v1585
        %v1587 = vadd.f32 %v1495, %v1511
        %v1588 = vrot.slane %v1587, 4
        %v1589 = vadd.f32 %v1587, %v1588
        %v1590 = vrot.slane %v1589, 2
        %v1591 = vadd.f32 %v1589, %v1590
        %v1592 = vrot.slane %v1591, 1
        %v1593 = vadd.f32 %v1591, %v1592
        %v1594 = vadd.f32 %v1496, %v1512
        %v1595 = vrot.slane %v1594, 4
        %v1596 = vadd.f32 %v1594, %v1595
        %v1597 = vrot.slane %v1596, 2
        %v1598 = vadd.f32 %v1596, %v1597
        %v1599 = vrot.slane %v1598, 1
        %v1600 = vadd.f32 %v1598, %v1599
        %v1601 = vadd.f32 %v1497, %v1513
        %v1602 = vrot.slane %v1601, 4
        %v1603 = vadd.f32 %v1601, %v1602
        %v1604 = vrot.slane %v1603, 2
        %v1605 = vadd.f32 %v1603, %v1604
        %v1606 = vrot.slane %v1605, 1
        %v1607 = vadd.f32 %v1605, %v1606
        %v1608 = vadd.f32 %v1498, %v1514
        %v1609 = vrot.slane %v1608, 4
        %v1610 = vadd.f32 %v1608, %v1609
        %v1611 = vrot.slane %v1610, 2
        %v1612 = vadd.f32 %v1610, %v1611
        %v1613 = vrot.slane %v1612, 1
        %v1614 = vadd.f32 %v1612, %v1613
        %v1615 = vadd.f32 %v1499, %v1515
        %v1616 = vrot.slane %v1615, 4
        %v1617 = vadd.f32 %v1615, %v1616
        %v1618 = vrot.slane %v1617, 2
        %v1619 = vadd.f32 %v1617, %v1618
        %v1620 = vrot.slane %v1619, 1
        %v1621 = vadd.f32 %v1619, %v1620
        %v1622 = vadd.f32 %v1500, %v1516
        %v1623 = vrot.slane %v1622, 4
        %v1624 = vadd.f32 %v1622, %v1623
        %v1625 = vrot.slane %v1624, 2
        %v1626 = vadd.f32 %v1624, %v1625
        %v1627 = vrot.slane %v1626, 1
        %v1628 = vadd.f32 %v1626, %v1627
        %v1629 = vld [vmem:[%s232] sm:$0xff]
        %vm1630 = vcmask 1040384
        %v1631 = vsel %vm1630, %v1523, %v1530
        %vm1632 = vcmask 1041408
        %v1633 = vsel %vm1632, %v1631, %v1537
        %vm1634 = vcmask 1042432
        %v1635 = vsel %vm1634, %v1633, %v1544
        %vm1636 = vcmask 1043456
        %v1637 = vsel %vm1636, %v1635, %v1551
        %vm1638 = vcmask 1044480
        %v1639 = vsel %vm1638, %v1637, %v1558
        %vm1640 = vcmask 1045504
        %v1641 = vsel %vm1640, %v1639, %v1565
        %vm1642 = vcmask 1046528
        %v1643 = vsel %vm1642, %v1641, %v1572
        %v1644 = vsel %vm1630, %v1579, %v1586
        %v1645 = vsel %vm1632, %v1644, %v1593
        %v1646 = vsel %vm1634, %v1645, %v1600
        %v1647 = vsel %vm1636, %v1646, %v1607
        %v1648 = vsel %vm1638, %v1647, %v1614
        %v1649 = vsel %vm1640, %v1648, %v1621
        %v1650 = vsel %vm1630, %v1628, inf
        %v1653 = vrot.slane %v1650, 1
        %v1654 = vrot.slane inf, 1
        %v1655 = vsel %vm1642, %v1653, %v1654
        %v1658 = vsel %vm1642, %v1649, %v1653
        %v1659 = vadd.s32 %v308, 16
        %v1660 = vadd.s32 %v308, 24
        %v1661 = vrot.slane %v308, 7
        %vm1662 = vcmp.eq.s32.totalorder %v1661, 1
        %v1663 = vrot.slane %v1629, 1
        %v1664 = vrot.slane %v1643, 1
        %v1665 = vrot.slane %v1658, 1
        %v1666 = vrot.slane %v1655, 1
        %vm1667 = vcmp.lt.s32.totalorder %v308, 7
        %v1668 = vsel %vm1667, %v1665, %v1666
        %v1669 = vsel %vm1667, %v1664, %v1665
        %v1670 = vsel %vm1667, %v1663, %v1664
        %v1671 = vsel %vm1667, %v1666, %v1663
        %v1672 = vrot.slane %v1629, 7
        %v1673 = vrot.slane %v1643, 7
        %v1674 = vrot.slane %v1658, 7
        %v1675 = vrot.slane %v1655, 7
        %vm1676 = vcmp.lt.s32.totalorder %v308, 1
        %v1677 = vsel %vm1676, %v1674, %v1675
        %v1678 = vsel %vm1676, %v1673, %v1674
        %v1679 = vsel %vm1676, %v1672, %v1673
        %v1680 = vsel %vm1676, %v1675, %v1672
        %v1681 = vand.u32 %v308, 1
        %v1682 = vand.u32 %v309, 1
        %v1683 = vand.u32 %v1659, 1
        %v1684 = vand.u32 %v1660, 1
        %vm1685 = vcmp.eq.s32.totalorder %v1681, 0
        %vm1686 = vcmp.eq.s32.totalorder %v1682, 0
        %vm1687 = vcmp.eq.s32.totalorder %v1683, 0
        %vm1688 = vcmp.eq.s32.totalorder %v1684, 0
        %v1689 = vsel %vm1662, 1, 0
        %v1690 = vlaneseq
        %v1691 = vshrl.u32 %v1690, 7
        %v1692 = vsub.s32 0, %v1691
        %v1693 = vrot.slane %v1689, %v1692
        %vm1694 = vcmp.eq.s32.totalorder %v1693, 1
        %vm1695 = vmxor %vm1685, %vm1694
        %vm1696 = vmxor %vm1686, %vm1694
        %vm1697 = vmxor %vm1687, %vm1694
        %vm1698 = vmxor %vm1688, %vm1694
        %v1699 = vsel %vm1695, 1, 0
        %v1700 = vsel %vm1696, 1, 0
        %v1701 = vsel %vm1697, 1, 0
        %v1702 = vsel %vm1698, 1, 0
        %1703 = vset.pattern.permute.xlu0 0
        %1704 = vperm.xlu0 %1703, %v1699
        %v1705 = vpop.permute.xlu0 %1704
        %1706 = vset.pattern.permute.xlu0 0
        %1707 = vperm.xlu0 %1706, %v1700
        %v1708 = vpop.permute.xlu0 %1707
        %1709 = vset.pattern.permute.xlu0 0
        %1710 = vperm.xlu0 %1709, %v1701
        %v1711 = vpop.permute.xlu0 %1710
        %1712 = vset.pattern.permute.xlu0 0
        %1713 = vperm.xlu0 %1712, %v1702
        %v1714 = vpop.permute.xlu0 %1713
        %vm1715 = vcmp.eq.s32.totalorder %v1705, 1
        %vm1716 = vcmp.eq.s32.totalorder %v1708, 1
        %vm1717 = vcmp.eq.s32.totalorder %v1711, 1
        %vm1718 = vcmp.eq.s32.totalorder %v1714, 1
        %v1719 = vsel %vm1715, %v1670, %v1680
        %v1720 = vsel %vm1716, %v1669, %v1679
        %v1721 = vsel %vm1717, %v1668, %v1678
        %v1722 = vsel %vm1718, %v1671, %v1677
        %v1723 = vand.u32 %v308, 2
        %v1724 = vand.u32 %v309, 2
        %v1725 = vand.u32 %v1659, 2
        %v1726 = vand.u32 %v1660, 2
        %vm1727 = vcmp.eq.s32.totalorder %v1723, 0
        %vm1728 = vcmp.eq.s32.totalorder %v1724, 0
        %vm1729 = vcmp.eq.s32.totalorder %v1725, 0
        %vm1730 = vcmp.eq.s32.totalorder %v1726, 0
        %vm1731 = vmxor %vm1727, %vm1685
        %vm1732 = vmxor %vm1728, %vm1686
        %vm1733 = vmxor %vm1729, %vm1687
        %vm1734 = vmxor %vm1730, %vm1688
        %vm1735 = vmxor %vm1731, 1
        %vm1736 = vmxor %vm1732, 1
        %vm1737 = vmxor %vm1733, 1
        %vm1738 = vmxor %vm1734, 1
        %v1739 = vmin.f32 %v1629, %v1719
        %v1740 = vmin.f32 %v1643, %v1720
        %v1741 = vmin.f32 %v1658, %v1721
        %v1742 = vmin.f32 %v1655, %v1722
        %v1743 = vmax.f32 %v1629, %v1719
        %v1744 = vmax.f32 %v1643, %v1720
        %v1745 = vmax.f32 %v1658, %v1721
        %v1746 = vmax.f32 %v1655, %v1722
        %v1747 = vsel %vm1735, 1, 0
        %v1748 = vsel %vm1736, 1, 0
        %v1749 = vsel %vm1737, 1, 0
        %v1750 = vsel %vm1738, 1, 0
        %vm1751 = vcmp.eq.s32.totalorder %v1747, 1
        %vm1752 = vcmp.eq.s32.totalorder %v1748, 1
        %vm1753 = vcmp.eq.s32.totalorder %v1749, 1
        %vm1754 = vcmp.eq.s32.totalorder %v1750, 1
        %v1755 = vsel %vm1751, %v1739, %v1743
        %v1756 = vsel %vm1752, %v1740, %v1744
        %v1757 = vsel %vm1753, %v1741, %v1745
        %v1758 = vsel %vm1754, %v1742, %v1746
        %v1759 = vrot.slane %v1755, 2
        %v1760 = vrot.slane %v1756, 2
        %v1761 = vrot.slane %v1757, 2
        %v1762 = vrot.slane %v1758, 2
        %vm1763 = vcmp.lt.s32.totalorder %v308, 6
        %v1764 = vsel %vm1763, %v1761, %v1762
        %v1765 = vsel %vm1763, %v1760, %v1761
        %v1766 = vsel %vm1763, %v1759, %v1760
        %v1767 = vsel %vm1763, %v1762, %v1759
        %v1768 = vrot.slane %v1755, 6
        %v1769 = vrot.slane %v1756, 6
        %v1770 = vrot.slane %v1757, 6
        %v1771 = vrot.slane %v1758, 6
        %vm1772 = vcmp.lt.s32.totalorder %v308, 2
        %v1773 = vsel %vm1772, %v1770, %v1771
        %v1774 = vsel %vm1772, %v1769, %v1770
        %v1775 = vsel %vm1772, %v1768, %v1769
        %v1776 = vsel %vm1772, %v1771, %v1768
        %vm1777 = vmxor %vm1727, %vm1694
        %vm1778 = vmxor %vm1728, %vm1694
        %vm1779 = vmxor %vm1729, %vm1694
        %vm1780 = vmxor %vm1730, %vm1694
        %v1781 = vsel %vm1777, 1, 0
        %v1782 = vsel %vm1778, 1, 0
        %v1783 = vsel %vm1779, 1, 0
        %v1784 = vsel %vm1780, 1, 0
        %1785 = vset.pattern.permute.xlu0 0
        %1786 = vperm.xlu0 %1785, %v1781
        %v1787 = vpop.permute.xlu0 %1786
        %1788 = vset.pattern.permute.xlu0 0
        %1789 = vperm.xlu0 %1788, %v1782
        %v1790 = vpop.permute.xlu0 %1789
        %1791 = vset.pattern.permute.xlu0 0
        %1792 = vperm.xlu0 %1791, %v1783
        %v1793 = vpop.permute.xlu0 %1792
        %1794 = vset.pattern.permute.xlu0 0
        %1795 = vperm.xlu0 %1794, %v1784
        %v1796 = vpop.permute.xlu0 %1795
        %vm1797 = vcmp.eq.s32.totalorder %v1787, 1
        %vm1798 = vcmp.eq.s32.totalorder %v1790, 1
        %vm1799 = vcmp.eq.s32.totalorder %v1793, 1
        %vm1800 = vcmp.eq.s32.totalorder %v1796, 1
        %v1801 = vsel %vm1797, %v1766, %v1776
        %v1802 = vsel %vm1798, %v1765, %v1775
        %v1803 = vsel %vm1799, %v1764, %v1774
        %v1804 = vsel %vm1800, %v1767, %v1773
        %v1805 = vand.u32 %v308, 4
        %v1806 = vand.u32 %v309, 4
        %v1807 = vand.u32 %v1659, 4
        %v1808 = vand.u32 %v1660, 4
        %vm1809 = vcmp.eq.s32.totalorder %v1805, 0
        %vm1810 = vcmp.eq.s32.totalorder %v1806, 0
        %vm1811 = vcmp.eq.s32.totalorder %v1807, 0
        %vm1812 = vcmp.eq.s32.totalorder %v1808, 0
        %vm1813 = vmxor %vm1809, %vm1727
        %vm1814 = vmxor %vm1810, %vm1728
        %vm1815 = vmxor %vm1811, %vm1729
        %vm1816 = vmxor %vm1812, %vm1730
        %vm1817 = vmxor %vm1813, 1
        %vm1818 = vmxor %vm1814, 1
        %vm1819 = vmxor %vm1815, 1
        %vm1820 = vmxor %vm1816, 1
        %v1821 = vmin.f32 %v1755, %v1801
        %v1822 = vmin.f32 %v1756, %v1802
        %v1823 = vmin.f32 %v1757, %v1803
        %v1824 = vmin.f32 %v1758, %v1804
        %v1825 = vmax.f32 %v1755, %v1801
        %v1826 = vmax.f32 %v1756, %v1802
        %v1827 = vmax.f32 %v1757, %v1803
        %v1828 = vmax.f32 %v1758, %v1804
        %v1829 = vsel %vm1817, 1, 0
        %v1830 = vsel %vm1818, 1, 0
        %v1831 = vsel %vm1819, 1, 0
        %v1832 = vsel %vm1820, 1, 0
        %vm1833 = vcmp.eq.s32.totalorder %v1829, 1
        %vm1834 = vcmp.eq.s32.totalorder %v1830, 1
        %vm1835 = vcmp.eq.s32.totalorder %v1831, 1
        %vm1836 = vcmp.eq.s32.totalorder %v1832, 1
        %v1837 = vsel %vm1833, %v1821, %v1825
        %v1838 = vsel %vm1834, %v1822, %v1826
        %v1839 = vsel %vm1835, %v1823, %v1827
        %v1840 = vsel %vm1836, %v1824, %v1828
        %v1841 = vrot.slane %v1837, 1
        %v1842 = vrot.slane %v1838, 1
        %v1843 = vrot.slane %v1839, 1
        %v1844 = vrot.slane %v1840, 1
        %v1845 = vsel %vm1667, %v1843, %v1844
        %v1846 = vsel %vm1667, %v1842, %v1843
        %v1847 = vsel %vm1667, %v1841, %v1842
        %v1848 = vsel %vm1667, %v1844, %v1841
        %v1849 = vrot.slane %v1837, 7
        %v1850 = vrot.slane %v1838, 7
        %v1851 = vrot.slane %v1839, 7
        %v1852 = vrot.slane %v1840, 7
        %v1853 = vsel %vm1676, %v1851, %v1852
        %v1854 = vsel %vm1676, %v1850, %v1851
        %v1855 = vsel %vm1676, %v1849, %v1850
        %v1856 = vsel %vm1676, %v1852, %v1849
        %v1857 = vsel %vm1715, %v1847, %v1856
        %v1858 = vsel %vm1716, %v1846, %v1855
        %v1859 = vsel %vm1717, %v1845, %v1854
        %v1860 = vsel %vm1718, %v1848, %v1853
        %vm1861 = vmxor %vm1809, %vm1685
        %vm1862 = vmxor %vm1810, %vm1686
        %vm1863 = vmxor %vm1811, %vm1687
        %vm1864 = vmxor %vm1812, %vm1688
        %vm1865 = vmxor %vm1861, 1
        %vm1866 = vmxor %vm1862, 1
        %vm1867 = vmxor %vm1863, 1
        %vm1868 = vmxor %vm1864, 1
        %v1869 = vmin.f32 %v1837, %v1857
        %v1870 = vmin.f32 %v1838, %v1858
        %v1871 = vmin.f32 %v1839, %v1859
        %v1872 = vmin.f32 %v1840, %v1860
        %v1873 = vmax.f32 %v1837, %v1857
        %v1874 = vmax.f32 %v1838, %v1858
        %v1875 = vmax.f32 %v1839, %v1859
        %v1876 = vmax.f32 %v1840, %v1860
        %v1877 = vsel %vm1865, 1, 0
        %v1878 = vsel %vm1866, 1, 0
        %v1879 = vsel %vm1867, 1, 0
        %v1880 = vsel %vm1868, 1, 0
        %vm1881 = vcmp.eq.s32.totalorder %v1877, 1
        %vm1882 = vcmp.eq.s32.totalorder %v1878, 1
        %vm1883 = vcmp.eq.s32.totalorder %v1879, 1
        %vm1884 = vcmp.eq.s32.totalorder %v1880, 1
        %v1885 = vsel %vm1881, %v1869, %v1873
        %v1886 = vsel %vm1882, %v1870, %v1874
        %v1887 = vsel %vm1883, %v1871, %v1875
        %v1888 = vsel %vm1884, %v1872, %v1876
        %v1889 = vrot.slane %v1885, 4
        %v1890 = vrot.slane %v1886, 4
        %v1891 = vrot.slane %v1887, 4
        %v1892 = vrot.slane %v1888, 4
        %vm1893 = vcmp.lt.s32.totalorder %v308, 4
        %v1894 = vsel %vm1893, %v1891, %v1892
        %v1895 = vsel %vm1893, %v1890, %v1891
        %v1896 = vsel %vm1893, %v1889, %v1890
        %v1897 = vsel %vm1893, %v1892, %v1889
        %vm1898 = vmxor %vm1809, %vm1694
        %vm1899 = vmxor %vm1810, %vm1694
        %vm1900 = vmxor %vm1811, %vm1694
        %vm1901 = vmxor %vm1812, %vm1694
        %v1902 = vsel %vm1898, 1, 0
        %v1903 = vsel %vm1899, 1, 0
        %v1904 = vsel %vm1900, 1, 0
        %v1905 = vsel %vm1901, 1, 0
        %1906 = vset.pattern.permute.xlu0 0
        %1907 = vperm.xlu0 %1906, %v1902
        %v1908 = vpop.permute.xlu0 %1907
        %1909 = vset.pattern.permute.xlu0 0
        %1910 = vperm.xlu0 %1909, %v1903
        %v1911 = vpop.permute.xlu0 %1910
        %1912 = vset.pattern.permute.xlu0 0
        %1913 = vperm.xlu0 %1912, %v1904
        %v1914 = vpop.permute.xlu0 %1913
        %1915 = vset.pattern.permute.xlu0 0
        %1916 = vperm.xlu0 %1915, %v1905
        %v1917 = vpop.permute.xlu0 %1916
        %vm1918 = vcmp.eq.s32.totalorder %v1908, 1
        %vm1919 = vcmp.eq.s32.totalorder %v1911, 1
        %vm1920 = vcmp.eq.s32.totalorder %v1914, 1
        %vm1921 = vcmp.eq.s32.totalorder %v1917, 1
        %v1922 = vsel %vm1918, %v1896, %v1897
        %v1923 = vsel %vm1919, %v1895, %v1896
        %v1924 = vsel %vm1920, %v1894, %v1895
        %v1925 = vsel %vm1921, %v1897, %v1894
        %v1926 = vand.u32 %v308, 8
        %v1927 = vand.u32 %v309, 8
        %v1928 = vand.u32 %v1659, 8
        %v1929 = vand.u32 %v1660, 8
        %vm1930 = vcmp.eq.s32.totalorder %v1926, 0
        %vm1931 = vcmp.eq.s32.totalorder %v1927, 0
        %vm1932 = vcmp.eq.s32.totalorder %v1928, 0
        %vm1933 = vcmp.eq.s32.totalorder %v1929, 0
        %vm1934 = vmxor %vm1930, %vm1809
        %vm1935 = vmxor %vm1931, %vm1810
        %vm1936 = vmxor %vm1932, %vm1811
        %vm1937 = vmxor %vm1933, %vm1812
        %vm1938 = vmxor %vm1934, 1
        %vm1939 = vmxor %vm1935, 1
        %vm1940 = vmxor %vm1936, 1
        %vm1941 = vmxor %vm1937, 1
        %v1942 = vmin.f32 %v1885, %v1922
        %v1943 = vmin.f32 %v1886, %v1923
        %v1944 = vmin.f32 %v1887, %v1924
        %v1945 = vmin.f32 %v1888, %v1925
        %v1946 = vmax.f32 %v1885, %v1922
        %v1947 = vmax.f32 %v1886, %v1923
        %v1948 = vmax.f32 %v1887, %v1924
        %v1949 = vmax.f32 %v1888, %v1925
        %v1950 = vsel %vm1938, 1, 0
        %v1951 = vsel %vm1939, 1, 0
        %v1952 = vsel %vm1940, 1, 0
        %v1953 = vsel %vm1941, 1, 0
        %vm1954 = vcmp.eq.s32.totalorder %v1950, 1
        %vm1955 = vcmp.eq.s32.totalorder %v1951, 1
        %vm1956 = vcmp.eq.s32.totalorder %v1952, 1
        %vm1957 = vcmp.eq.s32.totalorder %v1953, 1
        %v1958 = vsel %vm1954, %v1942, %v1946
        %v1959 = vsel %vm1955, %v1943, %v1947
        %v1960 = vsel %vm1956, %v1944, %v1948
        %v1961 = vsel %vm1957, %v1945, %v1949
        %v1962 = vrot.slane %v1958, 2
        %v1963 = vrot.slane %v1959, 2
        %v1964 = vrot.slane %v1960, 2
        %v1965 = vrot.slane %v1961, 2
        %v1966 = vsel %vm1763, %v1964, %v1965
        %v1967 = vsel %vm1763, %v1963, %v1964
        %v1968 = vsel %vm1763, %v1962, %v1963
        %v1969 = vsel %vm1763, %v1965, %v1962
        %v1970 = vrot.slane %v1958, 6
        %v1971 = vrot.slane %v1959, 6
        %v1972 = vrot.slane %v1960, 6
        %v1973 = vrot.slane %v1961, 6
        %v1974 = vsel %vm1772, %v1972, %v1973
        %v1975 = vsel %vm1772, %v1971, %v1972
        %v1976 = vsel %vm1772, %v1970, %v1971
        %v1977 = vsel %vm1772, %v1973, %v1970
        %v1978 = vsel %vm1797, %v1968, %v1977
        %v1979 = vsel %vm1798, %v1967, %v1976
        %v1980 = vsel %vm1799, %v1966, %v1975
        %v1981 = vsel %vm1800, %v1969, %v1974
        %vm1982 = vmxor %vm1930, %vm1727
        %vm1983 = vmxor %vm1931, %vm1728
        %vm1984 = vmxor %vm1932, %vm1729
        %vm1985 = vmxor %vm1933, %vm1730
        %vm1986 = vmxor %vm1982, 1
        %vm1987 = vmxor %vm1983, 1
        %vm1988 = vmxor %vm1984, 1
        %vm1989 = vmxor %vm1985, 1
        %v1990 = vmin.f32 %v1958, %v1978
        %v1991 = vmin.f32 %v1959, %v1979
        %v1992 = vmin.f32 %v1960, %v1980
        %v1993 = vmin.f32 %v1961, %v1981
        %v1994 = vmax.f32 %v1958, %v1978
        %v1995 = vmax.f32 %v1959, %v1979
        %v1996 = vmax.f32 %v1960, %v1980
        %v1997 = vmax.f32 %v1961, %v1981
        %v1998 = vsel %vm1986, 1, 0
        %v1999 = vsel %vm1987, 1, 0
        %v2000 = vsel %vm1988, 1, 0
        %v2001 = vsel %vm1989, 1, 0
        %vm2002 = vcmp.eq.s32.totalorder %v1998, 1
        %vm2003 = vcmp.eq.s32.totalorder %v1999, 1
        %vm2004 = vcmp.eq.s32.totalorder %v2000, 1
        %vm2005 = vcmp.eq.s32.totalorder %v2001, 1
        %v2006 = vsel %vm2002, %v1990, %v1994
        %v2007 = vsel %vm2003, %v1991, %v1995
        %v2008 = vsel %vm2004, %v1992, %v1996
        %v2009 = vsel %vm2005, %v1993, %v1997
        %v2010 = vrot.slane %v2006, 1
        %v2011 = vrot.slane %v2007, 1
        %v2012 = vrot.slane %v2008, 1
        %v2013 = vrot.slane %v2009, 1
        %v2014 = vsel %vm1667, %v2012, %v2013
        %v2015 = vsel %vm1667, %v2011, %v2012
        %v2016 = vsel %vm1667, %v2010, %v2011
        %v2017 = vsel %vm1667, %v2013, %v2010
        %v2018 = vrot.slane %v2006, 7
        %v2019 = vrot.slane %v2007, 7
        %v2020 = vrot.slane %v2008, 7
        %v2021 = vrot.slane %v2009, 7
        %v2022 = vsel %vm1676, %v2020, %v2021
        %v2023 = vsel %vm1676, %v2019, %v2020
        %v2024 = vsel %vm1676, %v2018, %v2019
        %v2025 = vsel %vm1676, %v2021, %v2018
        %v2026 = vsel %vm1715, %v2016, %v2025
        %v2027 = vsel %vm1716, %v2015, %v2024
        %v2028 = vsel %vm1717, %v2014, %v2023
        %v2029 = vsel %vm1718, %v2017, %v2022
        %vm2030 = vmxor %vm1930, %vm1685
        %vm2031 = vmxor %vm1931, %vm1686
        %vm2032 = vmxor %vm1932, %vm1687
        %vm2033 = vmxor %vm1933, %vm1688
        %vm2034 = vmxor %vm2030, 1
        %vm2035 = vmxor %vm2031, 1
        %vm2036 = vmxor %vm2032, 1
        %vm2037 = vmxor %vm2033, 1
        %v2038 = vmin.f32 %v2006, %v2026
        %v2039 = vmin.f32 %v2007, %v2027
        %v2040 = vmin.f32 %v2008, %v2028
        %v2041 = vmin.f32 %v2009, %v2029
        %v2042 = vmax.f32 %v2006, %v2026
        %v2043 = vmax.f32 %v2007, %v2027
        %v2044 = vmax.f32 %v2008, %v2028
        %v2045 = vmax.f32 %v2009, %v2029
        %v2046 = vsel %vm2034, 1, 0
        %v2047 = vsel %vm2035, 1, 0
        %v2048 = vsel %vm2036, 1, 0
        %v2049 = vsel %vm2037, 1, 0
        %vm2050 = vcmp.eq.s32.totalorder %v2046, 1
        %vm2051 = vcmp.eq.s32.totalorder %v2047, 1
        %vm2052 = vcmp.eq.s32.totalorder %v2048, 1
        %vm2053 = vcmp.eq.s32.totalorder %v2049, 1
        %v2054 = vsel %vm2050, %v2038, %v2042
        %v2055 = vsel %vm2051, %v2039, %v2043
        %v2056 = vsel %vm2052, %v2040, %v2044
        %v2057 = vsel %vm2053, %v2041, %v2045
        %vm2058 = vmxor %vm1930, %vm1694
        %vm2059 = vmxor %vm1931, %vm1694
        %vm2060 = vmxor %vm1932, %vm1694
        %vm2061 = vmxor %vm1933, %vm1694
        %v2062 = vsel %vm2058, 1, 0
        %v2063 = vsel %vm2059, 1, 0
        %v2064 = vsel %vm2060, 1, 0
        %v2065 = vsel %vm2061, 1, 0
        %2066 = vset.pattern.permute.xlu0 0
        %2067 = vperm.xlu0 %2066, %v2062
        %v2068 = vpop.permute.xlu0 %2067
        %2069 = vset.pattern.permute.xlu0 0
        %2070 = vperm.xlu0 %2069, %v2063
        %v2071 = vpop.permute.xlu0 %2070
        %2072 = vset.pattern.permute.xlu0 0
        %2073 = vperm.xlu0 %2072, %v2064
        %v2074 = vpop.permute.xlu0 %2073
        %2075 = vset.pattern.permute.xlu0 0
        %2076 = vperm.xlu0 %2075, %v2065
        %v2077 = vpop.permute.xlu0 %2076
        %vm2078 = vcmp.eq.s32.totalorder %v2068, 1
        %vm2079 = vcmp.eq.s32.totalorder %v2071, 1
        %vm2080 = vcmp.eq.s32.totalorder %v2074, 1
        %vm2081 = vcmp.eq.s32.totalorder %v2077, 1
        %v2082 = vsel %vm2078, %v2055, %v2057
        %v2083 = vsel %vm2079, %v2056, %v2054
        %v2084 = vsel %vm2080, %v2057, %v2055
        %v2085 = vsel %vm2081, %v2054, %v2056
        %v2086 = vand.u32 %v308, 16
        %v2087 = vand.u32 %v309, 16
        %v2088 = vand.u32 %v1659, 16
        %v2089 = vand.u32 %v1660, 16
        %vm2090 = vcmp.eq.s32.totalorder %v2086, 0
        %vm2091 = vcmp.eq.s32.totalorder %v2087, 0
        %vm2092 = vcmp.eq.s32.totalorder %v2088, 0
        %vm2093 = vcmp.eq.s32.totalorder %v2089, 0
        %vm2094 = vmxor %vm2090, %vm1930
        %vm2095 = vmxor %vm2091, %vm1931
        %vm2096 = vmxor %vm2092, %vm1932
        %vm2097 = vmxor %vm2093, %vm1933
        %vm2098 = vmxor %vm2094, 1
        %vm2099 = vmxor %vm2095, 1
        %vm2100 = vmxor %vm2096, 1
        %vm2101 = vmxor %vm2097, 1
        %v2102 = vmin.f32 %v2054, %v2082
        %v2103 = vmin.f32 %v2055, %v2083
        %v2104 = vmin.f32 %v2056, %v2084
        %v2105 = vmin.f32 %v2057, %v2085
        %v2106 = vmax.f32 %v2054, %v2082
        %v2107 = vmax.f32 %v2055, %v2083
        %v2108 = vmax.f32 %v2056, %v2084
        %v2109 = vmax.f32 %v2057, %v2085
        %v2110 = vsel %vm2098, 1, 0
        %v2111 = vsel %vm2099, 1, 0
        %v2112 = vsel %vm2100, 1, 0
        %v2113 = vsel %vm2101, 1, 0
        %vm2114 = vcmp.eq.s32.totalorder %v2110, 1
        %vm2115 = vcmp.eq.s32.totalorder %v2111, 1
        %vm2116 = vcmp.eq.s32.totalorder %v2112, 1
        %vm2117 = vcmp.eq.s32.totalorder %v2113, 1
        %v2118 = vsel %vm2114, %v2102, %v2106
        %v2119 = vsel %vm2115, %v2103, %v2107
        %v2120 = vsel %vm2116, %v2104, %v2108
        %v2121 = vsel %vm2117, %v2105, %v2109
        %v2122 = vrot.slane %v2118, 4
        %v2123 = vrot.slane %v2119, 4
        %v2124 = vrot.slane %v2120, 4
        %v2125 = vrot.slane %v2121, 4
        %v2126 = vsel %vm1893, %v2124, %v2125
        %v2127 = vsel %vm1893, %v2123, %v2124
        %v2128 = vsel %vm1893, %v2122, %v2123
        %v2129 = vsel %vm1893, %v2125, %v2122
        %v2130 = vsel %vm1918, %v2128, %v2129
        %v2131 = vsel %vm1919, %v2127, %v2128
        %v2132 = vsel %vm1920, %v2126, %v2127
        %v2133 = vsel %vm1921, %v2129, %v2126
        %vm2134 = vmxor %vm2090, %vm1809
        %vm2135 = vmxor %vm2091, %vm1810
        %vm2136 = vmxor %vm2092, %vm1811
        %vm2137 = vmxor %vm2093, %vm1812
        %vm2138 = vmxor %vm2134, 1
        %vm2139 = vmxor %vm2135, 1
        %vm2140 = vmxor %vm2136, 1
        %vm2141 = vmxor %vm2137, 1
        %v2142 = vmin.f32 %v2118, %v2130
        %v2143 = vmin.f32 %v2119, %v2131
        %v2144 = vmin.f32 %v2120, %v2132
        %v2145 = vmin.f32 %v2121, %v2133
        %v2146 = vmax.f32 %v2118, %v2130
        %v2147 = vmax.f32 %v2119, %v2131
        %v2148 = vmax.f32 %v2120, %v2132
        %v2149 = vmax.f32 %v2121, %v2133
        %v2150 = vsel %vm2138, 1, 0
        %v2151 = vsel %vm2139, 1, 0
        %v2152 = vsel %vm2140, 1, 0
        %v2153 = vsel %vm2141, 1, 0
        %vm2154 = vcmp.eq.s32.totalorder %v2150, 1
        %vm2155 = vcmp.eq.s32.totalorder %v2151, 1
        %vm2156 = vcmp.eq.s32.totalorder %v2152, 1
        %vm2157 = vcmp.eq.s32.totalorder %v2153, 1
        %v2158 = vsel %vm2154, %v2142, %v2146
        %v2159 = vsel %vm2155, %v2143, %v2147
        %v2160 = vsel %vm2156, %v2144, %v2148
        %v2161 = vsel %vm2157, %v2145, %v2149
        %v2162 = vrot.slane %v2158, 2
        %v2163 = vrot.slane %v2159, 2
        %v2164 = vrot.slane %v2160, 2
        %v2165 = vrot.slane %v2161, 2
        %v2166 = vsel %vm1763, %v2164, %v2165
        %v2167 = vsel %vm1763, %v2163, %v2164
        %v2168 = vsel %vm1763, %v2162, %v2163
        %v2169 = vsel %vm1763, %v2165, %v2162
        %v2170 = vrot.slane %v2158, 6
        %v2171 = vrot.slane %v2159, 6
        %v2172 = vrot.slane %v2160, 6
        %v2173 = vrot.slane %v2161, 6
        %v2174 = vsel %vm1772, %v2172, %v2173
        %v2175 = vsel %vm1772, %v2171, %v2172
        %v2176 = vsel %vm1772, %v2170, %v2171
        %v2177 = vsel %vm1772, %v2173, %v2170
        %v2178 = vsel %vm1797, %v2168, %v2177
        %v2179 = vsel %vm1798, %v2167, %v2176
        %v2180 = vsel %vm1799, %v2166, %v2175
        %v2181 = vsel %vm1800, %v2169, %v2174
        %vm2182 = vmxor %vm2090, %vm1727
        %vm2183 = vmxor %vm2091, %vm1728
        %vm2184 = vmxor %vm2092, %vm1729
        %vm2185 = vmxor %vm2093, %vm1730
        %vm2186 = vmxor %vm2182, 1
        %vm2187 = vmxor %vm2183, 1
        %vm2188 = vmxor %vm2184, 1
        %vm2189 = vmxor %vm2185, 1
        %v2190 = vmin.f32 %v2158, %v2178
        %v2191 = vmin.f32 %v2159, %v2179
        %v2192 = vmin.f32 %v2160, %v2180
        %v2193 = vmin.f32 %v2161, %v2181
        %v2194 = vmax.f32 %v2158, %v2178
        %v2195 = vmax.f32 %v2159, %v2179
        %v2196 = vmax.f32 %v2160, %v2180
        %v2197 = vmax.f32 %v2161, %v2181
        %v2198 = vsel %vm2186, 1, 0
        %v2199 = vsel %vm2187, 1, 0
        %v2200 = vsel %vm2188, 1, 0
        %v2201 = vsel %vm2189, 1, 0
        %vm2202 = vcmp.eq.s32.totalorder %v2198, 1
        %vm2203 = vcmp.eq.s32.totalorder %v2199, 1
        %vm2204 = vcmp.eq.s32.totalorder %v2200, 1
        %vm2205 = vcmp.eq.s32.totalorder %v2201, 1
        %v2206 = vsel %vm2202, %v2190, %v2194
        %v2207 = vsel %vm2203, %v2191, %v2195
        %v2208 = vsel %vm2204, %v2192, %v2196
        %v2209 = vsel %vm2205, %v2193, %v2197
        %v2210 = vrot.slane %v2206, 1
        %v2211 = vrot.slane %v2207, 1
        %v2212 = vrot.slane %v2208, 1
        %v2213 = vrot.slane %v2209, 1
        %v2214 = vsel %vm1667, %v2212, %v2213
        %v2215 = vsel %vm1667, %v2211, %v2212
        %v2216 = vsel %vm1667, %v2210, %v2211
        %v2217 = vsel %vm1667, %v2213, %v2210
        %v2218 = vrot.slane %v2206, 7
        %v2219 = vrot.slane %v2207, 7
        %v2220 = vrot.slane %v2208, 7
        %v2221 = vrot.slane %v2209, 7
        %v2222 = vsel %vm1676, %v2220, %v2221
        %v2223 = vsel %vm1676, %v2219, %v2220
        %v2224 = vsel %vm1676, %v2218, %v2219
        %v2225 = vsel %vm1676, %v2221, %v2218
        %v2226 = vsel %vm1715, %v2216, %v2225
        %v2227 = vsel %vm1716, %v2215, %v2224
        %v2228 = vsel %vm1717, %v2214, %v2223
        %v2229 = vsel %vm1718, %v2217, %v2222
        %vm2230 = vmxor %vm2090, %vm1685
        %vm2231 = vmxor %vm2091, %vm1686
        %vm2232 = vmxor %vm2092, %vm1687
        %vm2233 = vmxor %vm2093, %vm1688
        %vm2234 = vmxor %vm2230, 1
        %vm2235 = vmxor %vm2231, 1
        %vm2236 = vmxor %vm2232, 1
        %vm2237 = vmxor %vm2233, 1
        %v2238 = vmin.f32 %v2206, %v2226
        %v2239 = vmin.f32 %v2207, %v2227
        %v2240 = vmin.f32 %v2208, %v2228
        %v2241 = vmin.f32 %v2209, %v2229
        %v2242 = vmax.f32 %v2206, %v2226
        %v2243 = vmax.f32 %v2207, %v2227
        %v2244 = vmax.f32 %v2208, %v2228
        %v2245 = vmax.f32 %v2209, %v2229
        %v2246 = vsel %vm2234, 1, 0
        %v2247 = vsel %vm2235, 1, 0
        %v2248 = vsel %vm2236, 1, 0
        %v2249 = vsel %vm2237, 1, 0
        %vm2250 = vcmp.eq.s32.totalorder %v2246, 1
        %vm2251 = vcmp.eq.s32.totalorder %v2247, 1
        %vm2252 = vcmp.eq.s32.totalorder %v2248, 1
        %vm2253 = vcmp.eq.s32.totalorder %v2249, 1
        %v2254 = vsel %vm2250, %v2238, %v2242
        %v2255 = vsel %vm2251, %v2239, %v2243
        %v2256 = vsel %vm2252, %v2240, %v2244
        %v2257 = vsel %vm2253, %v2241, %v2245
        %v2258 = vand.u32 %v308, 32
        %v2259 = vand.u32 %v309, 32
        %v2260 = vand.u32 %v1659, 32
        %v2261 = vand.u32 %v1660, 32
        %vm2262 = vcmp.eq.s32.totalorder %v2258, 0
        %vm2263 = vcmp.eq.s32.totalorder %v2259, 0
        %vm2264 = vcmp.eq.s32.totalorder %v2260, 0
        %vm2265 = vcmp.eq.s32.totalorder %v2261, 0
        %vm2266 = vmxor %vm2262, %vm2090
        %vm2267 = vmxor %vm2263, %vm2091
        %vm2268 = vmxor %vm2264, %vm2092
        %vm2269 = vmxor %vm2265, %vm2093
        %vm2270 = vmxor %vm2266, 1
        %vm2271 = vmxor %vm2267, 1
        %vm2272 = vmxor %vm2268, 1
        %vm2273 = vmxor %vm2269, 1
        %v2274 = vmin.f32 %v2254, %v2256
        %v2275 = vmin.f32 %v2255, %v2257
        %v2276 = vmax.f32 %v2254, %v2256
        %v2277 = vmax.f32 %v2255, %v2257
        %v2278 = vsel %vm2270, 1, 0
        %v2279 = vsel %vm2271, 1, 0
        %v2280 = vsel %vm2272, 1, 0
        %v2281 = vsel %vm2273, 1, 0
        %vm2282 = vcmp.eq.s32.totalorder %v2278, 1
        %vm2283 = vcmp.eq.s32.totalorder %v2279, 1
        %vm2284 = vcmp.eq.s32.totalorder %v2280, 1
        %vm2285 = vcmp.eq.s32.totalorder %v2281, 1
        %v2286 = vsel %vm2282, %v2274, %v2276
        %v2287 = vsel %vm2283, %v2275, %v2277
        %v2288 = vsel %vm2284, %v2274, %v2276
        %v2289 = vsel %vm2285, %v2275, %v2277
        %v2290 = vsel %vm2078, %v2287, %v2289
        %v2291 = vsel %vm2079, %v2288, %v2286
        %v2292 = vsel %vm2080, %v2289, %v2287
        %v2293 = vsel %vm2081, %v2286, %v2288
        %vm2294 = vmxor %vm2262, %vm1930
        %vm2295 = vmxor %vm2263, %vm1931
        %vm2296 = vmxor %vm2264, %vm1932
        %vm2297 = vmxor %vm2265, %vm1933
        %vm2298 = vmxor %vm2294, 1
        %vm2299 = vmxor %vm2295, 1
        %vm2300 = vmxor %vm2296, 1
        %vm2301 = vmxor %vm2297, 1
        %v2302 = vmin.f32 %v2286, %v2290
        %v2303 = vmin.f32 %v2287, %v2291
        %v2304 = vmin.f32 %v2288, %v2292
        %v2305 = vmin.f32 %v2289, %v2293
        %v2306 = vmax.f32 %v2286, %v2290
        %v2307 = vmax.f32 %v2287, %v2291
        %v2308 = vmax.f32 %v2288, %v2292
        %v2309 = vmax.f32 %v2289, %v2293
        %v2310 = vsel %vm2298, 1, 0
        %v2311 = vsel %vm2299, 1, 0
        %v2312 = vsel %vm2300, 1, 0
        %v2313 = vsel %vm2301, 1, 0
        %vm2314 = vcmp.eq.s32.totalorder %v2310, 1
        %vm2315 = vcmp.eq.s32.totalorder %v2311, 1
        %vm2316 = vcmp.eq.s32.totalorder %v2312, 1
        %vm2317 = vcmp.eq.s32.totalorder %v2313, 1
        %v2318 = vsel %vm2314, %v2302, %v2306
        %v2319 = vsel %vm2315, %v2303, %v2307
        %v2320 = vsel %vm2316, %v2304, %v2308
        %v2321 = vsel %vm2317, %v2305, %v2309
        %v2322 = vrot.slane %v2318, 4
        %v2323 = vrot.slane %v2319, 4
        %v2324 = vrot.slane %v2320, 4
        %v2325 = vrot.slane %v2321, 4
        %v2326 = vsel %vm1893, %v2324, %v2325
        %v2327 = vsel %vm1893, %v2323, %v2324
        %v2328 = vsel %vm1893, %v2322, %v2323
        %v2329 = vsel %vm1893, %v2325, %v2322
        %v2330 = vsel %vm1918, %v2328, %v2329
        %v2331 = vsel %vm1919, %v2327, %v2328
        %v2332 = vsel %vm1920, %v2326, %v2327
        %v2333 = vsel %vm1921, %v2329, %v2326
        %vm2334 = vmxor %vm2262, %vm1809
        %vm2335 = vmxor %vm2263, %vm1810
        %vm2336 = vmxor %vm2264, %vm1811
        %vm2337 = vmxor %vm2265, %vm1812
        %vm2338 = vmxor %vm2334, 1
        %vm2339 = vmxor %vm2335, 1
        %vm2340 = vmxor %vm2336, 1
        %vm2341 = vmxor %vm2337, 1
        %v2342 = vmin.f32 %v2318, %v2330
        %v2343 = vmin.f32 %v2319, %v2331
        %v2344 = vmin.f32 %v2320, %v2332
        %v2345 = vmin.f32 %v2321, %v2333
        %v2346 = vmax.f32 %v2318, %v2330
        %v2347 = vmax.f32 %v2319, %v2331
        %v2348 = vmax.f32 %v2320, %v2332
        %v2349 = vmax.f32 %v2321, %v2333
        %v2350 = vsel %vm2338, 1, 0
        %v2351 = vsel %vm2339, 1, 0
        %v2352 = vsel %vm2340, 1, 0
        %v2353 = vsel %vm2341, 1, 0
        %vm2354 = vcmp.eq.s32.totalorder %v2350, 1
        %vm2355 = vcmp.eq.s32.totalorder %v2351, 1
        %vm2356 = vcmp.eq.s32.totalorder %v2352, 1
        %vm2357 = vcmp.eq.s32.totalorder %v2353, 1
        %v2358 = vsel %vm2354, %v2342, %v2346
        %v2359 = vsel %vm2355, %v2343, %v2347
        %v2360 = vsel %vm2356, %v2344, %v2348
        %v2361 = vsel %vm2357, %v2345, %v2349
        %v2362 = vrot.slane %v2358, 2
        %v2363 = vrot.slane %v2359, 2
        %v2364 = vrot.slane %v2360, 2
        %v2365 = vrot.slane %v2361, 2
        %v2366 = vsel %vm1763, %v2364, %v2365
        %v2367 = vsel %vm1763, %v2363, %v2364
        %v2368 = vsel %vm1763, %v2362, %v2363
        %v2369 = vsel %vm1763, %v2365, %v2362
        %v2370 = vrot.slane %v2358, 6
        %v2371 = vrot.slane %v2359, 6
        %v2372 = vrot.slane %v2360, 6
        %v2373 = vrot.slane %v2361, 6
        %v2374 = vsel %vm1772, %v2372, %v2373
        %v2375 = vsel %vm1772, %v2371, %v2372
        %v2376 = vsel %vm1772, %v2370, %v2371
        %v2377 = vsel %vm1772, %v2373, %v2370
        %v2378 = vsel %vm1797, %v2368, %v2377
        %v2379 = vsel %vm1798, %v2367, %v2376
        %v2380 = vsel %vm1799, %v2366, %v2375
        %v2381 = vsel %vm1800, %v2369, %v2374
        %vm2382 = vmxor %vm2262, %vm1727
        %vm2383 = vmxor %vm2263, %vm1728
        %vm2384 = vmxor %vm2264, %vm1729
        %vm2385 = vmxor %vm2265, %vm1730
        %vm2386 = vmxor %vm2382, 1
        %vm2387 = vmxor %vm2383, 1
        %vm2388 = vmxor %vm2384, 1
        %vm2389 = vmxor %vm2385, 1
        %v2390 = vmin.f32 %v2358, %v2378
        %v2391 = vmin.f32 %v2359, %v2379
        %v2392 = vmin.f32 %v2360, %v2380
        %v2393 = vmin.f32 %v2361, %v2381
        %v2394 = vmax.f32 %v2358, %v2378
        %v2395 = vmax.f32 %v2359, %v2379
        %v2396 = vmax.f32 %v2360, %v2380
        %v2397 = vmax.f32 %v2361, %v2381
        %v2398 = vsel %vm2386, 1, 0
        %v2399 = vsel %vm2387, 1, 0
        %v2400 = vsel %vm2388, 1, 0
        %v2401 = vsel %vm2389, 1, 0
        %vm2402 = vcmp.eq.s32.totalorder %v2398, 1
        %vm2403 = vcmp.eq.s32.totalorder %v2399, 1
        %vm2404 = vcmp.eq.s32.totalorder %v2400, 1
        %vm2405 = vcmp.eq.s32.totalorder %v2401, 1
        %v2406 = vsel %vm2402, %v2390, %v2394
        %v2407 = vsel %vm2403, %v2391, %v2395
        %v2408 = vsel %vm2404, %v2392, %v2396
        %v2409 = vsel %vm2405, %v2393, %v2397
        %v2410 = vrot.slane %v2406, 1
        %v2411 = vrot.slane %v2407, 1
        %v2412 = vrot.slane %v2408, 1
        %v2413 = vrot.slane %v2409, 1
        %v2414 = vsel %vm1667, %v2412, %v2413
        %v2415 = vsel %vm1667, %v2411, %v2412
        %v2416 = vsel %vm1667, %v2410, %v2411
        %v2417 = vrot.slane %v2406, 7
        %v2418 = vrot.slane %v2407, 7
        %v2419 = vrot.slane %v2408, 7
        %v2420 = vrot.slane %v2409, 7
        %v2421 = vsel %vm1676, %v2418, %v2419
        %v2422 = vsel %vm1676, %v2417, %v2418
        %v2423 = vsel %vm1676, %v2420, %v2417
        %v2424 = vsel %vm1715, %v2416, %v2423
        %v2425 = vsel %vm1716, %v2415, %v2422
        %v2426 = vsel %vm1717, %v2414, %v2421
        %vm2427 = vmxor %vm2262, %vm1685
        %vm2428 = vmxor %vm2263, %vm1686
        %vm2429 = vmxor %vm2264, %vm1687
        %vm2430 = vmxor %vm2427, 1
        %vm2431 = vmxor %vm2428, 1
        %vm2432 = vmxor %vm2429, 1
        %v2433 = vmin.f32 %v2406, %v2424
        %v2434 = vmin.f32 %v2407, %v2425
        %v2435 = vmin.f32 %v2408, %v2426
        %v2436 = vmax.f32 %v2406, %v2424
        %v2437 = vmax.f32 %v2407, %v2425
        %v2438 = vmax.f32 %v2408, %v2426
        %v2439 = vsel %vm2430, 1, 0
        %v2440 = vsel %vm2431, 1, 0
        %v2441 = vsel %vm2432, 1, 0
        %vm2442 = vcmp.eq.s32.totalorder %v2439, 1
        %vm2443 = vcmp.eq.s32.totalorder %v2440, 1
        %vm2444 = vcmp.eq.s32.totalorder %v2441, 1
        %v2445 = vsel %vm2442, %v2433, %v2436
        %v2446 = vsel %vm2443, %v2434, %v2437
        %v2447 = vsel %vm2444, %v2435, %v2438
        %2448 = vst [vmem:[%s282] sm:$0xff] %v2445
        %2449 = vst [vmem:[%s282 + $0x8] sm:$0xff] %v2446
        %2450 = vst [vmem:[%s282 + $0x10] sm:$0xff] %v2447
        %s2451 = sand.u32 %s127, 1
        %s2452 = scalar_lea.sflag [#allocation4], %s2451
        %s2453 = sand.u32 %s127, 1
        %s2454 = smul.addr %s2453, 24
        %s2455 = scalar_lea.vmem [#allocation8], %s2454
        // Predicated region
        $region45: #{tpu_custom_call.1} parent=31 // pred_check
          %p2456 = pneg %p137
        $region46: #{tpu_custom_call.1} parent=31 // pred_check_branch
          %2458 = sbr.rel (%p2456) target = $region48
        $region47: #{tpu_custom_call.1} parent=31 // pred_region
          %s2460 = ssub.s32 384, 384
          %2461 = vsyncadd %s2452, %s2460
          %s2462 = smul.addr %s27, 6
          %s2463 = sadd.s32 %s28, %s2462
          %s2464 = smul.addr %s2463, 128
          %s2465 = scalar_lea.hbm %s3, %s2464
          %s2466 = sshll.u32 %s2455, 4
          %s2467 = int_to_ptr.vmem [resolvable:$true] %s2466
          %2472 = dma.vmem_to_hbm [thread:$0]  %s2467, 384, %s2465, %s2452, 128, 256, 8
        $region48: #{tpu_custom_call.1} parent=31 // pred_fallthru
          _
      $region32: #{tpu_custom_call.1} parent=5 // pred_fallthru
        _
      %p2473 = scmp.le.s32.totalorder 2, %s18
      // Predicated region
      $region49: #{tpu_custom_call.1} parent=5 // pred_check
        %p2474 = pneg %p2473
      $region50: #{tpu_custom_call.1} parent=5 // pred_check_branch
        %2476 = sbr.rel (%p2474) target = $region52
      $region51: #{tpu_custom_call.1} parent=5 // pred_region
        %s2477 = ssub.s32 %s18, 2
        // Predicated region
        $region53: #{tpu_custom_call.1} parent=51 // pred_check
          %p2478 = pneg %p143
        $region54: #{tpu_custom_call.1} parent=51 // pred_check_branch
          %2480 = sbr.rel (%p2478) target = $region56
        $region55: #{tpu_custom_call.1} parent=51 // pred_region
          %s2481 = sand.u32 %s128, 1
          %s2482 = scalar_lea.sflag [#allocation4], %s2481
          %s2483 = sand.u32 %s128, 1
          %s2484 = smul.addr %s2483, 24
          %s2485 = scalar_lea.vmem [#allocation8], %s2484
          %2486 = dma.done %s2482, 384
        $region56: #{tpu_custom_call.1} parent=51 // pred_fallthru
          _
      $region52: #{tpu_custom_call.1} parent=5 // pred_fallthru
        _
    $region6: #{tpu_custom_call.1} parent=1 // loop_footer
      %s22 = sadd.s32 1, %s18
    $region7: #{tpu_custom_call.1} parent=1 // loop_footer_branch
      %17 = sbr.rel target = $region3
    $region8: #{tpu_custom_call.1} parent=1 // loop_exit
      _
    %2487 = vsyncpa [#allocation3], 1
    %s2488 = scalar_lea.sflag [#allocation3], 1
    %2489 = vsyncpa %s2488, 1
    %2490 = vsyncpa [#allocation6], 1
    %s2491 = scalar_lea.sflag [#allocation6], 1
    %2492 = vsyncpa %s2491, 1
    %2493 = vsyncpa [#allocation4], 1
    %s2494 = scalar_lea.sflag [#allocation4], 1
    %2495 = vsyncpa %s2494, 1

</llo_original>
